<compile_context>
chip_gen: v6e
topology: v6e:2x2x1
jax: 0.10.0
libtpu: 0.0.40
codegen_flags: <defaults>
</compile_context>

<pallas_src>
import functools

import numpy as np
import jax
import jax.numpy as jnp
from jax import lax
from jax.experimental import pallas as pl
from jax.experimental.pallas import tpu as pltpu


def _round_up(n, m):
    return ((n + m - 1) // m) * m


def _pad_to(a, shape):
    return jnp.pad(a, [(0, s - d) for d, s in zip(a.shape, shape)])


def _lstm_kernel(x_ref, wx_ref, wh_ref, b_ref, wfc_ref, bfc_ref, out_ref,
                 xproj_ref):
    """LSTM recurrence + final Linear, fully in VMEM.

    x_ref    : (T*Bp, Ip)    time-major inputs, flattened over (T, Bp)
    wx_ref   : (Ip, 4*Hp)    fused input->hidden weight (gate blocks of Hp)
    wh_ref   : (Hp, 4*Hp)    fused hidden->hidden weight
    b_ref    : (1, 4*Hp)     fused bias (b_ih + b_hh), gate blocks of Hp
    wfc_ref  : (Hp, Cp)      fc weight (transposed)
    bfc_ref  : (1, Cp)       fc bias
    out_ref  : (Bp, Cp)      fc(h_T)
    xproj_ref: (T*Bp, 4*Hp)  VMEM scratch holding the hoisted input projection
    """
    Hp = wh_ref.shape[0]
    Bp = out_ref.shape[0]
    T = x_ref.shape[0] // Bp

    # Input projection has no recurrent dependence: one big matmul + bias,
    # hoisted out of the time loop and written to VMEM scratch.
    xproj_ref[...] = (
        jnp.dot(x_ref[...], wx_ref[...], preferred_element_type=jnp.float32)
        + b_ref[...])

    h = jnp.zeros((Bp, Hp), jnp.float32)
    c = jnp.zeros((Bp, Hp), jnp.float32)

    # T is static at trace time; a full unroll gives the scheduler visibility
    # across iterations and makes every slice static + aligned.
    for t in range(T):
        # Single fused recurrent matmul per step; read the weight from its
        # VMEM ref here (do not pin it in vregs across the whole loop).
        gates = xproj_ref[t * Bp:(t + 1) * Bp, :] + jnp.dot(
            h, wh_ref[...], preferred_element_type=jnp.float32)
        # PyTorch gate order [i, f, g, o]; offsets are multiples of Hp=128
        # lanes, so these slices are vreg-aligned and free.
        i = jax.nn.sigmoid(gates[:, 0 * Hp:1 * Hp])
        f = jax.nn.sigmoid(gates[:, 1 * Hp:2 * Hp])
        g = jnp.tanh(gates[:, 2 * Hp:3 * Hp])
        o = jax.nn.sigmoid(gates[:, 3 * Hp:4 * Hp])
        c = f * c + i * g
        h = o * jnp.tanh(c)

    out_ref[...] = (
        jnp.dot(h, wfc_ref[...], preferred_element_type=jnp.float32)
        + bfc_ref[...])


def init_params(key, input_size, hidden_size, num_classes):
    """Deterministic init mirroring PyTorch's U(-1/sqrt(H), 1/sqrt(H))."""
    k = 1.0 / float(np.sqrt(hidden_size))
    keys = jax.random.split(key, 6)
    u = lambda kk, shape: jax.random.uniform(kk, shape, jnp.float32, -k, k)
    return dict(
        w_ih=u(keys[0], (4 * hidden_size, input_size)),
        w_hh=u(keys[1], (4 * hidden_size, hidden_size)),
        b_ih=u(keys[2], (4 * hidden_size,)),
        b_hh=u(keys[3], (4 * hidden_size,)),
        fc_w=u(keys[4], (num_classes, hidden_size)),
        fc_b=u(keys[5], (num_classes,)),
    )


def prepare_params(params, input_size, hidden_size, num_classes):
    """One-time weight preprocessing (fuse gates, transpose, pad).

    Everything expensive (split / transpose / concat / pad / bias fusion) is
    done here once, so the per-call forward path does no weight reshaping.
    """
    I, H, C = input_size, hidden_size, num_classes
    Ip = _round_up(I, 8)
    Hp = _round_up(H, 128)
    Cp = _round_up(C, 128)

    w_ih, w_hh = params["w_ih"], params["w_hh"]
    b = params["b_ih"] + params["b_hh"]

    # Per-gate transposed blocks, zero-padded so gate k occupies lanes
    # [k*Hp, (k+1)*Hp) of the fused weight / bias.
    wx_blocks = [_pad_to(w_ih[k * H:(k + 1) * H, :].T, (Ip, Hp)) for k in range(4)]
    wh_blocks = [_pad_to(w_hh[k * H:(k + 1) * H, :].T, (Hp, Hp)) for k in range(4)]
    b_blocks = [_pad_to(b[k * H:(k + 1) * H][None, :], (1, Hp)) for k in range(4)]

    return dict(
        wx=jnp.concatenate(wx_blocks, axis=1),          # (Ip, 4*Hp)
        wh=jnp.concatenate(wh_blocks, axis=1),          # (Hp, 4*Hp)
        b=jnp.concatenate(b_blocks, axis=1),            # (1, 4*Hp)
        wfc=_pad_to(params["fc_w"].T, (Hp, Cp)),        # (Hp, Cp)
        bfc=_pad_to(params["fc_b"][None, :], (1, Cp)),  # (1, Cp)
    )


@functools.partial(jax.jit, static_argnames=("num_classes",))
def lstm_forward_pallas(x, prep, num_classes):
    """Forward pass: only x padding/transposition happens per call."""
    B, T, _ = x.shape
    Ip = prep["wx"].shape[0]
    Hp = prep["wh"].shape[0]
    Cp = prep["wfc"].shape[1]
    Bp = _round_up(B, 8)

    # Time-major, zero-padded, flattened over (T, Bp): (T*Bp, Ip).
    x_tm = _pad_to(jnp.transpose(x, (1, 0, 2)).astype(jnp.float32), (T, Bp, Ip))
    x_tm = x_tm.reshape(T * Bp, Ip)

    out_p = pl.pallas_call(
        _lstm_kernel,
        out_shape=jax.ShapeDtypeStruct((Bp, Cp), jnp.float32),
        in_specs=[pl.BlockSpec(memory_space=pltpu.MemorySpace.VMEM)] * 6,
        out_specs=pl.BlockSpec(memory_space=pltpu.MemorySpace.VMEM),
        scratch_shapes=[pltpu.VMEM((T * Bp, 4 * Hp), jnp.float32)],
    )(x_tm, prep["wx"], prep["wh"], prep["b"], prep["wfc"], prep["bfc"])

    return out_p[:B, :num_classes]


def lstm_forward_ref(x, params, hidden_size):
    """Pure-JAX reference matching torch.nn.LSTM(batch_first=True) + Linear."""
    H = hidden_size
    B = x.shape[0]
    w_ih, w_hh = params["w_ih"], params["w_hh"]
    b_ih, b_hh = params["b_ih"], params["b_hh"]

    def step(carry, x_t):
        h, c = carry
        gates = x_t @ w_ih.T + b_ih + h @ w_hh.T + b_hh
        i = jax.nn.sigmoid(gates[:, 0 * H:1 * H])
        f = jax.nn.sigmoid(gates[:, 1 * H:2 * H])
        g = jnp.tanh(gates[:, 2 * H:3 * H])
        o = jax.nn.sigmoid(gates[:, 3 * H:4 * H])
        c = f * c + i * g
        h = o * jnp.tanh(c)
        return (h, c), None

    h0 = jnp.zeros((B, H), jnp.float32)
    c0 = jnp.zeros((B, H), jnp.float32)
    (h, _), _ = lax.scan(step, (h0, c0), jnp.transpose(x, (1, 0, 2)))
    return h @ params["fc_w"].T + params["fc_b"]


if __name__ == "__main__":
    # Module config (from the PyTorch file's globals).
    hidden_size, input_size, num_classes, num_layers = 2, 1, 1, 1
    batch, seq = 2, 8

    key = jax.random.PRNGKey(0)
    kx, kp = jax.random.split(key)
    x = jax.random.normal(kx, (batch, seq, input_size), jnp.float32)
    params = init_params(kp, input_size, hidden_size, num_classes)

    # One-time weight prep (cached); per-call forward only pads x.
    prep = prepare_params(params, input_size, hidden_size, num_classes)

    out = lstm_forward_pallas(x, prep, num_classes)
    out = jax.block_until_ready(out)

    ref = lstm_forward_ref(x, params, hidden_size)
    np.testing.assert_allclose(np.asarray(out), np.asarray(ref), rtol=1e-5, atol=1e-5)
    print("KERNEL_OK")
</pallas_src>

<mosaic_0001>
module attributes {stable_mosaic.version = 11 : i64} {
  func.func @_lstm_kernel(%arg0: memref<64x8xf32, #tpu.memory_space<vmem>>, %arg1: memref<8x512xf32, #tpu.memory_space<vmem>>, %arg2: memref<128x512xf32, #tpu.memory_space<vmem>>, %arg3: memref<1x512xf32, #tpu.memory_space<vmem>>, %arg4: memref<128x128xf32, #tpu.memory_space<vmem>>, %arg5: memref<1x128xf32, #tpu.memory_space<vmem>>, %arg6: memref<8x128xf32, #tpu.memory_space<vmem>>, %arg7: memref<64x512xf32, #tpu.memory_space<vmem>>) attributes {dimension_semantics = [], scalar_prefetch = 0 : i64, scratch_operands = 1 : i64, tpu.core_type = #tpu.core_type<tc>} {
    %c0 = arith.constant 0 : index
    %c0_0 = arith.constant 0 : index
    %0 = vector.load %arg0[%c0, %c0_0] : memref<64x8xf32, #tpu.memory_space<vmem>>, vector<64x8xf32>
    %c0_1 = arith.constant 0 : index
    %c0_2 = arith.constant 0 : index
    %1 = vector.load %arg1[%c0_1, %c0_2] : memref<8x512xf32, #tpu.memory_space<vmem>>, vector<8x512xf32>
    %cst = arith.constant dense<0.000000e+00> : vector<64x512xf32>
    %2 = tpu.matmul %0, %1, %cst {dimension_numbers = #tpu.dot_dimension_numbers<[1], [0], [0], [1], [0, 0, 1, 1], [], []>} : vector<64x8xf32>, vector<8x512xf32>, vector<64x512xf32> -> vector<64x512xf32>
    %c0_3 = arith.constant 0 : index
    %c0_4 = arith.constant 0 : index
    %3 = vector.load %arg3[%c0_3, %c0_4] : memref<1x512xf32, #tpu.memory_space<vmem>>, vector<1x512xf32>
    %4 = vector.broadcast %3 : vector<1x512xf32> to vector<64x512xf32>
    %5 = arith.addf %2, %4 : vector<64x512xf32>
    %c0_5 = arith.constant 0 : index
    %c0_6 = arith.constant 0 : index
    %6 = vector.load %arg7[%c0_5, %c0_6] : memref<64x512xf32, #tpu.memory_space<vmem>>, vector<64x512xf32>
    tpu.vector_store %arg7[%c0_5, %c0_6], %5 {strides = array<i32>} : memref<64x512xf32, #tpu.memory_space<vmem>>, vector<64x512xf32>,
    %cst_7 = arith.constant 0.000000e+00 : f32
    %7 = vector.broadcast %cst_7 : f32 to vector<8x128xf32>
    %cst_8 = arith.constant 0.000000e+00 : f32
    %8 = vector.broadcast %cst_8 : f32 to vector<8x128xf32>
    %c0_9 = arith.constant 0 : index
    %c0_10 = arith.constant 0 : index
    %9 = vector.load %arg7[%c0_9, %c0_10] : memref<64x512xf32, #tpu.memory_space<vmem>>, vector<8x512xf32>
    %c0_11 = arith.constant 0 : index
    %c0_12 = arith.constant 0 : index
    %10 = vector.load %arg2[%c0_11, %c0_12] : memref<128x512xf32, #tpu.memory_space<vmem>>, vector<128x512xf32>
    %cst_13 = arith.constant dense<0.000000e+00> : vector<8x512xf32>
    %11 = tpu.matmul %7, %10, %cst_13 {dimension_numbers = #tpu.dot_dimension_numbers<[1], [0], [0], [1], [0, 0, 1, 1], [], []>} : vector<8x128xf32>, vector<128x512xf32>, vector<8x512xf32> -> vector<8x512xf32>
    %12 = arith.addf %9, %11 : vector<8x512xf32>
    %13 = vector.extract_strided_slice %12 {offsets = [0, 0], sizes = [8, 128], strides = [1, 1]} : vector<8x512xf32> to vector<8x128xf32>
    %14 = arith.negf %13 : vector<8x128xf32>
    %15 = math.exp %14 : vector<8x128xf32>
    %cst_14 = arith.constant 1.000000e+00 : f32
    %16 = vector.broadcast %cst_14 : f32 to vector<8x128xf32>
    %17 = arith.addf %16, %15 : vector<8x128xf32>
    %18 = arith.divf %16, %17 : vector<8x128xf32>
    %19 = vector.extract_strided_slice %12 {offsets = [0, 128], sizes = [8, 128], strides = [1, 1]} : vector<8x512xf32> to vector<8x128xf32>
    %20 = arith.negf %19 : vector<8x128xf32>
    %21 = math.exp %20 : vector<8x128xf32>
    %cst_15 = arith.constant 1.000000e+00 : f32
    %22 = vector.broadcast %cst_15 : f32 to vector<8x128xf32>
    %23 = arith.addf %22, %21 : vector<8x128xf32>
    %24 = arith.divf %22, %23 : vector<8x128xf32>
    %25 = vector.extract_strided_slice %12 {offsets = [0, 256], sizes = [8, 128], strides = [1, 1]} : vector<8x512xf32> to vector<8x128xf32>
    %26 = math.tanh %25 : vector<8x128xf32>
    %27 = vector.extract_strided_slice %12 {offsets = [0, 384], sizes = [8, 128], strides = [1, 1]} : vector<8x512xf32> to vector<8x128xf32>
    %28 = arith.negf %27 : vector<8x128xf32>
    %29 = math.exp %28 : vector<8x128xf32>
    %cst_16 = arith.constant 1.000000e+00 : f32
    %30 = vector.broadcast %cst_16 : f32 to vector<8x128xf32>
    %31 = arith.addf %30, %29 : vector<8x128xf32>
    %32 = arith.divf %30, %31 : vector<8x128xf32>
    %33 = arith.mulf %24, %8 : vector<8x128xf32>
    %34 = arith.mulf %18, %26 : vector<8x128xf32>
    %35 = arith.addf %33, %34 : vector<8x128xf32>
    %36 = math.tanh %35 : vector<8x128xf32>
    %37 = arith.mulf %32, %36 : vector<8x128xf32>
    %c8 = arith.constant 8 : index
    %c0_17 = arith.constant 0 : index
    %38 = vector.load %arg7[%c8, %c0_17] : memref<64x512xf32, #tpu.memory_space<vmem>>, vector<8x512xf32>
    %c0_18 = arith.constant 0 : index
    %c0_19 = arith.constant 0 : index
    %39 = vector.load %arg2[%c0_18, %c0_19] : memref<128x512xf32, #tpu.memory_space<vmem>>, vector<128x512xf32>
    %cst_20 = arith.constant dense<0.000000e+00> : vector<8x512xf32>
    %40 = tpu.matmul %37, %39, %cst_20 {dimension_numbers = #tpu.dot_dimension_numbers<[1], [0], [0], [1], [0, 0, 1, 1], [], []>} : vector<8x128xf32>, vector<128x512xf32>, vector<8x512xf32> -> vector<8x512xf32>
    %41 = arith.addf %38, %40 : vector<8x512xf32>
    %42 = vector.extract_strided_slice %41 {offsets = [0, 0], sizes = [8, 128], strides = [1, 1]} : vector<8x512xf32> to vector<8x128xf32>
    %43 = arith.negf %42 : vector<8x128xf32>
    %44 = math.exp %43 : vector<8x128xf32>
    %cst_21 = arith.constant 1.000000e+00 : f32
    %45 = vector.broadcast %cst_21 : f32 to vector<8x128xf32>
    %46 = arith.addf %45, %44 : vector<8x128xf32>
    %47 = arith.divf %45, %46 : vector<8x128xf32>
    %48 = vector.extract_strided_slice %41 {offsets = [0, 128], sizes = [8, 128], strides = [1, 1]} : vector<8x512xf32> to vector<8x128xf32>
    %49 = arith.negf %48 : vector<8x128xf32>
    %50 = math.exp %49 : vector<8x128xf32>
    %cst_22 = arith.constant 1.000000e+00 : f32
    %51 = vector.broadcast %cst_22 : f32 to vector<8x128xf32>
    %52 = arith.addf %51, %50 : vector<8x128xf32>
    %53 = arith.divf %51, %52 : vector<8x128xf32>
    %54 = vector.extract_strided_slice %41 {offsets = [0, 256], sizes = [8, 128], strides = [1, 1]} : vector<8x512xf32> to vector<8x128xf32>
    %55 = math.tanh %54 : vector<8x128xf32>
    %56 = vector.extract_strided_slice %41 {offsets = [0, 384], sizes = [8, 128], strides = [1, 1]} : vector<8x512xf32> to vector<8x128xf32>
    %57 = arith.negf %56 : vector<8x128xf32>
    %58 = math.exp %57 : vector<8x128xf32>
    %cst_23 = arith.constant 1.000000e+00 : f32
    %59 = vector.broadcast %cst_23 : f32 to vector<8x128xf32>
    %60 = arith.addf %59, %58 : vector<8x128xf32>
    %61 = arith.divf %59, %60 : vector<8x128xf32>
    %62 = arith.mulf %53, %35 : vector<8x128xf32>
    %63 = arith.mulf %47, %55 : vector<8x128xf32>
    %64 = arith.addf %62, %63 : vector<8x128xf32>
    %65 = math.tanh %64 : vector<8x128xf32>
    %66 = arith.mulf %61, %65 : vector<8x128xf32>
    %c16 = arith.constant 16 : index
    %c0_24 = arith.constant 0 : index
    %67 = vector.load %arg7[%c16, %c0_24] : memref<64x512xf32, #tpu.memory_space<vmem>>, vector<8x512xf32>
    %c0_25 = arith.constant 0 : index
    %c0_26 = arith.constant 0 : index
    %68 = vector.load %arg2[%c0_25, %c0_26] : memref<128x512xf32, #tpu.memory_space<vmem>>, vector<128x512xf32>
    %cst_27 = arith.constant dense<0.000000e+00> : vector<8x512xf32>
    %69 = tpu.matmul %66, %68, %cst_27 {dimension_numbers = #tpu.dot_dimension_numbers<[1], [0], [0], [1], [0, 0, 1, 1], [], []>} : vector<8x128xf32>, vector<128x512xf32>, vector<8x512xf32> -> vector<8x512xf32>
    %70 = arith.addf %67, %69 : vector<8x512xf32>
    %71 = vector.extract_strided_slice %70 {offsets = [0, 0], sizes = [8, 128], strides = [1, 1]} : vector<8x512xf32> to vector<8x128xf32>
    %72 = arith.negf %71 : vector<8x128xf32>
    %73 = math.exp %72 : vector<8x128xf32>
    %cst_28 = arith.constant 1.000000e+00 : f32
    %74 = vector.broadcast %cst_28 : f32 to vector<8x128xf32>
    %75 = arith.addf %74, %73 : vector<8x128xf32>
    %76 = arith.divf %74, %75 : vector<8x128xf32>
    %77 = vector.extract_strided_slice %70 {offsets = [0, 128], sizes = [8, 128], strides = [1, 1]} : vector<8x512xf32> to vector<8x128xf32>
    %78 = arith.negf %77 : vector<8x128xf32>
    %79 = math.exp %78 : vector<8x128xf32>
    %cst_29 = arith.constant 1.000000e+00 : f32
    %80 = vector.broadcast %cst_29 : f32 to vector<8x128xf32>
    %81 = arith.addf %80, %79 : vector<8x128xf32>
    %82 = arith.divf %80, %81 : vector<8x128xf32>
    %83 = vector.extract_strided_slice %70 {offsets = [0, 256], sizes = [8, 128], strides = [1, 1]} : vector<8x512xf32> to vector<8x128xf32>
    %84 = math.tanh %83 : vector<8x128xf32>
    %85 = vector.extract_strided_slice %70 {offsets = [0, 384], sizes = [8, 128], strides = [1, 1]} : vector<8x512xf32> to vector<8x128xf32>
    %86 = arith.negf %85 : vector<8x128xf32>
    %87 = math.exp %86 : vector<8x128xf32>
    %cst_30 = arith.constant 1.000000e+00 : f32
    %88 = vector.broadcast %cst_30 : f32 to vector<8x128xf32>
    %89 = arith.addf %88, %87 : vector<8x128xf32>
    %90 = arith.divf %88, %89 : vector<8x128xf32>
    %91 = arith.mulf %82, %64 : vector<8x128xf32>
    %92 = arith.mulf %76, %84 : vector<8x128xf32>
    %93 = arith.addf %91, %92 : vector<8x128xf32>
    %94 = math.tanh %93 : vector<8x128xf32>
    %95 = arith.mulf %90, %94 : vector<8x128xf32>
    %c24 = arith.constant 24 : index
    %c0_31 = arith.constant 0 : index
    %96 = vector.load %arg7[%c24, %c0_31] : memref<64x512xf32, #tpu.memory_space<vmem>>, vector<8x512xf32>
    %c0_32 = arith.constant 0 : index
    %c0_33 = arith.constant 0 : index
    %97 = vector.load %arg2[%c0_32, %c0_33] : memref<128x512xf32, #tpu.memory_space<vmem>>, vector<128x512xf32>
    %cst_34 = arith.constant dense<0.000000e+00> : vector<8x512xf32>
    %98 = tpu.matmul %95, %97, %cst_34 {dimension_numbers = #tpu.dot_dimension_numbers<[1], [0], [0], [1], [0, 0, 1, 1], [], []>} : vector<8x128xf32>, vector<128x512xf32>, vector<8x512xf32> -> vector<8x512xf32>
    %99 = arith.addf %96, %98 : vector<8x512xf32>
    %100 = vector.extract_strided_slice %99 {offsets = [0, 0], sizes = [8, 128], strides = [1, 1]} : vector<8x512xf32> to vector<8x128xf32>
    %101 = arith.negf %100 : vector<8x128xf32>
    %102 = math.exp %101 : vector<8x128xf32>
    %cst_35 = arith.constant 1.000000e+00 : f32
    %103 = vector.broadcast %cst_35 : f32 to vector<8x128xf32>
    %104 = arith.addf %103, %102 : vector<8x128xf32>
    %105 = arith.divf %103, %104 : vector<8x128xf32>
    %106 = vector.extract_strided_slice %99 {offsets = [0, 128], sizes = [8, 128], strides = [1, 1]} : vector<8x512xf32> to vector<8x128xf32>
    %107 = arith.negf %106 : vector<8x128xf32>
    %108 = math.exp %107 : vector<8x128xf32>
    %cst_36 = arith.constant 1.000000e+00 : f32
    %109 = vector.broadcast %cst_36 : f32 to vector<8x128xf32>
    %110 = arith.addf %109, %108 : vector<8x128xf32>
    %111 = arith.divf %109, %110 : vector<8x128xf32>
    %112 = vector.extract_strided_slice %99 {offsets = [0, 256], sizes = [8, 128], strides = [1, 1]} : vector<8x512xf32> to vector<8x128xf32>
    %113 = math.tanh %112 : vector<8x128xf32>
    %114 = vector.extract_strided_slice %99 {offsets = [0, 384], sizes = [8, 128], strides = [1, 1]} : vector<8x512xf32> to vector<8x128xf32>
    %115 = arith.negf %114 : vector<8x128xf32>
    %116 = math.exp %115 : vector<8x128xf32>
    %cst_37 = arith.constant 1.000000e+00 : f32
    %117 = vector.broadcast %cst_37 : f32 to vector<8x128xf32>
    %118 = arith.addf %117, %116 : vector<8x128xf32>
    %119 = arith.divf %117, %118 : vector<8x128xf32>
    %120 = arith.mulf %111, %93 : vector<8x128xf32>
    %121 = arith.mulf %105, %113 : vector<8x128xf32>
    %122 = arith.addf %120, %121 : vector<8x128xf32>
    %123 = math.tanh %122 : vector<8x128xf32>
    %124 = arith.mulf %119, %123 : vector<8x128xf32>
    %c32 = arith.constant 32 : index
    %c0_38 = arith.constant 0 : index
    %125 = vector.load %arg7[%c32, %c0_38] : memref<64x512xf32, #tpu.memory_space<vmem>>, vector<8x512xf32>
    %c0_39 = arith.constant 0 : index
    %c0_40 = arith.constant 0 : index
    %126 = vector.load %arg2[%c0_39, %c0_40] : memref<128x512xf32, #tpu.memory_space<vmem>>, vector<128x512xf32>
    %cst_41 = arith.constant dense<0.000000e+00> : vector<8x512xf32>
    %127 = tpu.matmul %124, %126, %cst_41 {dimension_numbers = #tpu.dot_dimension_numbers<[1], [0], [0], [1], [0, 0, 1, 1], [], []>} : vector<8x128xf32>, vector<128x512xf32>, vector<8x512xf32> -> vector<8x512xf32>
    %128 = arith.addf %125, %127 : vector<8x512xf32>
    %129 = vector.extract_strided_slice %128 {offsets = [0, 0], sizes = [8, 128], strides = [1, 1]} : vector<8x512xf32> to vector<8x128xf32>
    %130 = arith.negf %129 : vector<8x128xf32>
    %131 = math.exp %130 : vector<8x128xf32>
    %cst_42 = arith.constant 1.000000e+00 : f32
    %132 = vector.broadcast %cst_42 : f32 to vector<8x128xf32>
    %133 = arith.addf %132, %131 : vector<8x128xf32>
    %134 = arith.divf %132, %133 : vector<8x128xf32>
    %135 = vector.extract_strided_slice %128 {offsets = [0, 128], sizes = [8, 128], strides = [1, 1]} : vector<8x512xf32> to vector<8x128xf32>
    %136 = arith.negf %135 : vector<8x128xf32>
    %137 = math.exp %136 : vector<8x128xf32>
    %cst_43 = arith.constant 1.000000e+00 : f32
    %138 = vector.broadcast %cst_43 : f32 to vector<8x128xf32>
    %139 = arith.addf %138, %137 : vector<8x128xf32>
    %140 = arith.divf %138, %139 : vector<8x128xf32>
    %141 = vector.extract_strided_slice %128 {offsets = [0, 256], sizes = [8, 128], strides = [1, 1]} : vector<8x512xf32> to vector<8x128xf32>
    %142 = math.tanh %141 : vector<8x128xf32>
    %143 = vector.extract_strided_slice %128 {offsets = [0, 384], sizes = [8, 128], strides = [1, 1]} : vector<8x512xf32> to vector<8x128xf32>
    %144 = arith.negf %143 : vector<8x128xf32>
    %145 = math.exp %144 : vector<8x128xf32>
    %cst_44 = arith.constant 1.000000e+00 : f32
    %146 = vector.broadcast %cst_44 : f32 to vector<8x128xf32>
    %147 = arith.addf %146, %145 : vector<8x128xf32>
    %148 = arith.divf %146, %147 : vector<8x128xf32>
    %149 = arith.mulf %140, %122 : vector<8x128xf32>
    %150 = arith.mulf %134, %142 : vector<8x128xf32>
    %151 = arith.addf %149, %150 : vector<8x128xf32>
    %152 = math.tanh %151 : vector<8x128xf32>
    %153 = arith.mulf %148, %152 : vector<8x128xf32>
    %c40 = arith.constant 40 : index
    %c0_45 = arith.constant 0 : index
    %154 = vector.load %arg7[%c40, %c0_45] : memref<64x512xf32, #tpu.memory_space<vmem>>, vector<8x512xf32>
    %c0_46 = arith.constant 0 : index
    %c0_47 = arith.constant 0 : index
    %155 = vector.load %arg2[%c0_46, %c0_47] : memref<128x512xf32, #tpu.memory_space<vmem>>, vector<128x512xf32>
    %cst_48 = arith.constant dense<0.000000e+00> : vector<8x512xf32>
    %156 = tpu.matmul %153, %155, %cst_48 {dimension_numbers = #tpu.dot_dimension_numbers<[1], [0], [0], [1], [0, 0, 1, 1], [], []>} : vector<8x128xf32>, vector<128x512xf32>, vector<8x512xf32> -> vector<8x512xf32>
    %157 = arith.addf %154, %156 : vector<8x512xf32>
    %158 = vector.extract_strided_slice %157 {offsets = [0, 0], sizes = [8, 128], strides = [1, 1]} : vector<8x512xf32> to vector<8x128xf32>
    %159 = arith.negf %158 : vector<8x128xf32>
    %160 = math.exp %159 : vector<8x128xf32>
    %cst_49 = arith.constant 1.000000e+00 : f32
    %161 = vector.broadcast %cst_49 : f32 to vector<8x128xf32>
    %162 = arith.addf %161, %160 : vector<8x128xf32>
    %163 = arith.divf %161, %162 : vector<8x128xf32>
    %164 = vector.extract_strided_slice %157 {offsets = [0, 128], sizes = [8, 128], strides = [1, 1]} : vector<8x512xf32> to vector<8x128xf32>
    %165 = arith.negf %164 : vector<8x128xf32>
    %166 = math.exp %165 : vector<8x128xf32>
    %cst_50 = arith.constant 1.000000e+00 : f32
    %167 = vector.broadcast %cst_50 : f32 to vector<8x128xf32>
    %168 = arith.addf %167, %166 : vector<8x128xf32>
    %169 = arith.divf %167, %168 : vector<8x128xf32>
    %170 = vector.extract_strided_slice %157 {offsets = [0, 256], sizes = [8, 128], strides = [1, 1]} : vector<8x512xf32> to vector<8x128xf32>
    %171 = math.tanh %170 : vector<8x128xf32>
    %172 = vector.extract_strided_slice %157 {offsets = [0, 384], sizes = [8, 128], strides = [1, 1]} : vector<8x512xf32> to vector<8x128xf32>
    %173 = arith.negf %172 : vector<8x128xf32>
    %174 = math.exp %173 : vector<8x128xf32>
    %cst_51 = arith.constant 1.000000e+00 : f32
    %175 = vector.broadcast %cst_51 : f32 to vector<8x128xf32>
    %176 = arith.addf %175, %174 : vector<8x128xf32>
    %177 = arith.divf %175, %176 : vector<8x128xf32>
    %178 = arith.mulf %169, %151 : vector<8x128xf32>
    %179 = arith.mulf %163, %171 : vector<8x128xf32>
    %180 = arith.addf %178, %179 : vector<8x128xf32>
    %181 = math.tanh %180 : vector<8x128xf32>
    %182 = arith.mulf %177, %181 : vector<8x128xf32>
    %c48 = arith.constant 48 : index
    %c0_52 = arith.constant 0 : index
    %183 = vector.load %arg7[%c48, %c0_52] : memref<64x512xf32, #tpu.memory_space<vmem>>, vector<8x512xf32>
    %c0_53 = arith.constant 0 : index
    %c0_54 = arith.constant 0 : index
    %184 = vector.load %arg2[%c0_53, %c0_54] : memref<128x512xf32, #tpu.memory_space<vmem>>, vector<128x512xf32>
    %cst_55 = arith.constant dense<0.000000e+00> : vector<8x512xf32>
    %185 = tpu.matmul %182, %184, %cst_55 {dimension_numbers = #tpu.dot_dimension_numbers<[1], [0], [0], [1], [0, 0, 1, 1], [], []>} : vector<8x128xf32>, vector<128x512xf32>, vector<8x512xf32> -> vector<8x512xf32>
    %186 = arith.addf %183, %185 : vector<8x512xf32>
    %187 = vector.extract_strided_slice %186 {offsets = [0, 0], sizes = [8, 128], strides = [1, 1]} : vector<8x512xf32> to vector<8x128xf32>
    %188 = arith.negf %187 : vector<8x128xf32>
    %189 = math.exp %188 : vector<8x128xf32>
    %cst_56 = arith.constant 1.000000e+00 : f32
    %190 = vector.broadcast %cst_56 : f32 to vector<8x128xf32>
    %191 = arith.addf %190, %189 : vector<8x128xf32>
    %192 = arith.divf %190, %191 : vector<8x128xf32>
    %193 = vector.extract_strided_slice %186 {offsets = [0, 128], sizes = [8, 128], strides = [1, 1]} : vector<8x512xf32> to vector<8x128xf32>
    %194 = arith.negf %193 : vector<8x128xf32>
    %195 = math.exp %194 : vector<8x128xf32>
    %cst_57 = arith.constant 1.000000e+00 : f32
    %196 = vector.broadcast %cst_57 : f32 to vector<8x128xf32>
    %197 = arith.addf %196, %195 : vector<8x128xf32>
    %198 = arith.divf %196, %197 : vector<8x128xf32>
    %199 = vector.extract_strided_slice %186 {offsets = [0, 256], sizes = [8, 128], strides = [1, 1]} : vector<8x512xf32> to vector<8x128xf32>
    %200 = math.tanh %199 : vector<8x128xf32>
    %201 = vector.extract_strided_slice %186 {offsets = [0, 384], sizes = [8, 128], strides = [1, 1]} : vector<8x512xf32> to vector<8x128xf32>
    %202 = arith.negf %201 : vector<8x128xf32>
    %203 = math.exp %202 : vector<8x128xf32>
    %cst_58 = arith.constant 1.000000e+00 : f32
    %204 = vector.broadcast %cst_58 : f32 to vector<8x128xf32>
    %205 = arith.addf %204, %203 : vector<8x128xf32>
    %206 = arith.divf %204, %205 : vector<8x128xf32>
    %207 = arith.mulf %198, %180 : vector<8x128xf32>
    %208 = arith.mulf %192, %200 : vector<8x128xf32>
    %209 = arith.addf %207, %208 : vector<8x128xf32>
    %210 = math.tanh %209 : vector<8x128xf32>
    %211 = arith.mulf %206, %210 : vector<8x128xf32>
    %c56 = arith.constant 56 : index
    %c0_59 = arith.constant 0 : index
    %212 = vector.load %arg7[%c56, %c0_59] : memref<64x512xf32, #tpu.memory_space<vmem>>, vector<8x512xf32>
    %c0_60 = arith.constant 0 : index
    %c0_61 = arith.constant 0 : index
    %213 = vector.load %arg2[%c0_60, %c0_61] : memref<128x512xf32, #tpu.memory_space<vmem>>, vector<128x512xf32>
    %cst_62 = arith.constant dense<0.000000e+00> : vector<8x512xf32>
    %214 = tpu.matmul %211, %213, %cst_62 {dimension_numbers = #tpu.dot_dimension_numbers<[1], [0], [0], [1], [0, 0, 1, 1], [], []>} : vector<8x128xf32>, vector<128x512xf32>, vector<8x512xf32> -> vector<8x512xf32>
    %215 = arith.addf %212, %214 : vector<8x512xf32>
    %216 = vector.extract_strided_slice %215 {offsets = [0, 0], sizes = [8, 128], strides = [1, 1]} : vector<8x512xf32> to vector<8x128xf32>
    %217 = arith.negf %216 : vector<8x128xf32>
    %218 = math.exp %217 : vector<8x128xf32>
    %cst_63 = arith.constant 1.000000e+00 : f32
    %219 = vector.broadcast %cst_63 : f32 to vector<8x128xf32>
    %220 = arith.addf %219, %218 : vector<8x128xf32>
    %221 = arith.divf %219, %220 : vector<8x128xf32>
    %222 = vector.extract_strided_slice %215 {offsets = [0, 128], sizes = [8, 128], strides = [1, 1]} : vector<8x512xf32> to vector<8x128xf32>
    %223 = arith.negf %222 : vector<8x128xf32>
    %224 = math.exp %223 : vector<8x128xf32>
    %cst_64 = arith.constant 1.000000e+00 : f32
    %225 = vector.broadcast %cst_64 : f32 to vector<8x128xf32>
    %226 = arith.addf %225, %224 : vector<8x128xf32>
    %227 = arith.divf %225, %226 : vector<8x128xf32>
    %228 = vector.extract_strided_slice %215 {offsets = [0, 256], sizes = [8, 128], strides = [1, 1]} : vector<8x512xf32> to vector<8x128xf32>
    %229 = math.tanh %228 : vector<8x128xf32>
    %230 = vector.extract_strided_slice %215 {offsets = [0, 384], sizes = [8, 128], strides = [1, 1]} : vector<8x512xf32> to vector<8x128xf32>
    %231 = arith.negf %230 : vector<8x128xf32>
    %232 = math.exp %231 : vector<8x128xf32>
    %cst_65 = arith.constant 1.000000e+00 : f32
    %233 = vector.broadcast %cst_65 : f32 to vector<8x128xf32>
    %234 = arith.addf %233, %232 : vector<8x128xf32>
    %235 = arith.divf %233, %234 : vector<8x128xf32>
    %236 = arith.mulf %227, %209 : vector<8x128xf32>
    %237 = arith.mulf %221, %229 : vector<8x128xf32>
    %238 = arith.addf %236, %237 : vector<8x128xf32>
    %239 = math.tanh %238 : vector<8x128xf32>
    %240 = arith.mulf %235, %239 : vector<8x128xf32>
    %c0_66 = arith.constant 0 : index
    %c0_67 = arith.constant 0 : index
    %241 = vector.load %arg4[%c0_66, %c0_67] : memref<128x128xf32, #tpu.memory_space<vmem>>, vector<128x128xf32>
    %cst_68 = arith.constant dense<0.000000e+00> : vector<8x128xf32>
    %242 = tpu.matmul %240, %241, %cst_68 {dimension_numbers = #tpu.dot_dimension_numbers<[1], [0], [0], [1], [0, 0, 1, 1], [], []>} : vector<8x128xf32>, vector<128x128xf32>, vector<8x128xf32> -> vector<8x128xf32>
    %c0_69 = arith.constant 0 : index
    %c0_70 = arith.constant 0 : index
    %243 = vector.load %arg5[%c0_69, %c0_70] : memref<1x128xf32, #tpu.memory_space<vmem>>, vector<1x128xf32>
    %244 = vector.broadcast %243 : vector<1x128xf32> to vector<8x128xf32>
    %245 = arith.addf %242, %244 : vector<8x128xf32>
    %c0_71 = arith.constant 0 : index
    %c0_72 = arith.constant 0 : index
    %246 = vector.load %arg6[%c0_71, %c0_72] : memref<8x128xf32, #tpu.memory_space<vmem>>, vector<8x128xf32>
    tpu.vector_store %arg6[%c0_71, %c0_72], %245 {strides = array<i32>} : memref<8x128xf32, #tpu.memory_space<vmem>>, vector<8x128xf32>,
    return
  }
}

</mosaic_0001>

<llo_original>
// kernel: lstm_forward_pallas.1
$region0: #{lstm_forward_pallas.1}
  #allocation0 [shape = 'u32[]', space=smem, size = 0x4, offset = 0x4, fixed_abs, tag = 'smem constant byte address 0x4 - core index']
  #allocation1 [shape = 'u32[144,128]{1,0:T(1,128)}', space=vmem, size = 0x12000, scoped, tag = 'internal scratch']
  #allocation2 [shape = 'f32[64,512]{1,0:T(8,128)}', space=vmem, size = 0x20000, scoped, tag = 'scratch operand']
  %s0 = inlined_call_operand.vmem [shape: f32[64,8], index: 0, kind: input, shape index: {}]
  %s1 = inlined_call_operand.vmem [shape: f32[8,512], index: 1, kind: input, shape index: {}]
  %s2 = inlined_call_operand.hbm [shape: f32[128,512], index: 2, kind: input, shape index: {}]
  %s3 = inlined_call_operand.vmem [shape: f32[1,512], index: 3, kind: input, shape index: {}]
  %s4 = inlined_call_operand.hbm [shape: f32[128,128], index: 4, kind: input, shape index: {}]
  %s5 = inlined_call_operand.vmem [shape: f32[1,128], index: 5, kind: input, shape index: {}]
  %s6 = inlined_call_operand.vmem [shape: f32[8,128], index: 6, kind: output, shape index: {}]
  %s7 = sld [smem:[#allocation0]]
  $region42: #{lstm_forward_pallas.1} parent=0
    _
  %s9 = ssub.s32 1, %s7
  %s10 = scalar_select 0, %s9, %s7
  $region1: #{lstm_forward_pallas.1} parent=0
    #allocation3 [shape = 'u8[262144]{0}', space=vmem, size = 0x40000, scoped, tag = 'input window, operand 2, single buffered']
    #allocation4 [shape = 's32[1]{0}', space=sflag, size = 0x4, scoped, tag = 'scoped memory for lstm_forward_pallas.1']
    #allocation5 [shape = 'u8[65536]{0}', space=vmem, size = 0x10000, scoped, tag = 'input window, operand 4, single buffered']
    #allocation6 [shape = 's32[1]{0}', space=sflag, size = 0x4, scoped, tag = 'scoped memory for lstm_forward_pallas.1']
    %11 = vsyncpa [#allocation4], 0
    %12 = vsyncpa [#allocation6], 0
    // Predicated region
    $region2: #{lstm_forward_pallas.1} parent=1 // pred_check
      _
    $region3: #{lstm_forward_pallas.1} parent=1 // pred_check_branch
      %14 = sbr.rel (0) target = $region5
    $region4: #{lstm_forward_pallas.1} parent=1 // pred_region
      _
    $region5: #{lstm_forward_pallas.1} parent=1 // pred_fallthru
      _
    // Predicated region
    $region6: #{lstm_forward_pallas.1} parent=1 // pred_check
      _
    $region7: #{lstm_forward_pallas.1} parent=1 // pred_check_branch
      %16 = sbr.rel (0) target = $region9
    $region8: #{lstm_forward_pallas.1} parent=1 // pred_region
      _
    $region9: #{lstm_forward_pallas.1} parent=1 // pred_fallthru
      _
    // Predicated region
    $region10: #{lstm_forward_pallas.1} parent=1 // pred_check
      _
    $region11: #{lstm_forward_pallas.1} parent=1 // pred_check_branch
      %18 = sbr.rel (0) target = $region13
    $region12: #{lstm_forward_pallas.1} parent=1 // pred_region
      %s20 = ssub.s32 8192, 8192
      %21 = vsyncadd [#allocation4], %s20
      %s22 = sshll.u32 [#allocation3], 4
      %s23 = int_to_ptr.vmem [resolvable:$true] %s22
      %28 = dma.hbm_to_vmem [thread:$0]  %s2, 8192, %s23, [#allocation4], 512, 512, 32
    $region13: #{lstm_forward_pallas.1} parent=1 // pred_fallthru
      _
    // Predicated region
    $region14: #{lstm_forward_pallas.1} parent=1 // pred_check
      _
    $region15: #{lstm_forward_pallas.1} parent=1 // pred_check_branch
      %30 = sbr.rel (0) target = $region17
    $region16: #{lstm_forward_pallas.1} parent=1 // pred_region
      _
    $region17: #{lstm_forward_pallas.1} parent=1 // pred_fallthru
      _
    // Predicated region
    $region18: #{lstm_forward_pallas.1} parent=1 // pred_check
      _
    $region19: #{lstm_forward_pallas.1} parent=1 // pred_check_branch
      %32 = sbr.rel (0) target = $region21
    $region20: #{lstm_forward_pallas.1} parent=1 // pred_region
      %s34 = ssub.s32 2048, 2048
      %35 = vsyncadd [#allocation6], %s34
      %s36 = sshll.u32 [#allocation5], 4
      %s37 = int_to_ptr.vmem [resolvable:$true] %s36
      %42 = dma.hbm_to_vmem [thread:$0]  %s4, 2048, %s37, [#allocation6], 128, 128, 8
    $region21: #{lstm_forward_pallas.1} parent=1 // pred_fallthru
      _
    // Predicated region
    $region22: #{lstm_forward_pallas.1} parent=1 // pred_check
      _
    $region23: #{lstm_forward_pallas.1} parent=1 // pred_check_branch
      %44 = sbr.rel (0) target = $region25
    $region24: #{lstm_forward_pallas.1} parent=1 // pred_region
      _
    $region25: #{lstm_forward_pallas.1} parent=1 // pred_fallthru
      _
    // Predicated region
    $region26: #{lstm_forward_pallas.1} parent=1 // pred_check
      _
    $region27: #{lstm_forward_pallas.1} parent=1 // pred_check_branch
      %46 = sbr.rel (0) target = $region29
    $region28: #{lstm_forward_pallas.1} parent=1 // pred_region
      %47 = dma.done [#allocation4], 8192
    $region29: #{lstm_forward_pallas.1} parent=1 // pred_fallthru
      _
    // Predicated region
    $region30: #{lstm_forward_pallas.1} parent=1 // pred_check
      _
    $region31: #{lstm_forward_pallas.1} parent=1 // pred_check_branch
      %49 = sbr.rel (0) target = $region33
    $region32: #{lstm_forward_pallas.1} parent=1 // pred_region
      %50 = dma.done [#allocation6], 2048
    $region33: #{lstm_forward_pallas.1} parent=1 // pred_fallthru
      _
    %v51 = vld [vmem:[%s0] sm:$0xff]
    %v52 = vld [vmem:[%s0 + $0x8] sm:$0xff]
    %v53 = vld [vmem:[%s0 + $0x10] sm:$0xff]
    %v54 = vld [vmem:[%s0 + $0x18] sm:$0xff]
    %v55 = vld [vmem:[%s0 + $0x20] sm:$0xff]
    %v56 = vld [vmem:[%s0 + $0x28] sm:$0xff]
    %v57 = vld [vmem:[%s0 + $0x30] sm:$0xff]
    %v58 = vld [vmem:[%s0 + $0x38] sm:$0xff]
    %v59 = vld [vmem:[%s1] sm:$0xff]
    %v60 = vld [vmem:[%s1 + $0x8] sm:$0xff]
    %v61 = vld [vmem:[%s1 + $0x10] sm:$0xff]
    %v62 = vld [vmem:[%s1 + $0x18] sm:$0xff]
    %v63 = vld [vmem:[%s3] sm:$0xf]
    %v65 = vlaneseq
    %v66 = vshrl.u32 %v65, 7
    %v67 = vsub.s32 0, %v66
    %v68 = vrot.slane %v63, %v67
    %v69 = vlaneseq
    %v70 = vshrl.u32 %v69, 7
    %v71 = vsub.s32 1, %v70
    %v72 = vrot.slane %v63, %v71
    %v73 = vlaneseq
    %v74 = vshrl.u32 %v73, 7
    %v75 = vsub.s32 2, %v74
    %v76 = vrot.slane %v63, %v75
    %v77 = vlaneseq
    %v78 = vshrl.u32 %v77, 7
    %v79 = vsub.s32 3, %v78
    %v80 = vrot.slane %v63, %v79
    %vm85 = vcmask 64512
    %v87 = vsel %vm85, %v51, 0
    %v90 = vsel %vm85, %v52, 0
    %v93 = vsel %vm85, %v53, 0
    %v96 = vsel %vm85, %v54, 0
    %v99 = vsel %vm85, %v55, 0
    %v102 = vsel %vm85, %v56, 0
    %v105 = vsel %vm85, %v57, 0
    %v108 = vsel %vm85, %v58, 0
    %110 = vmatprep.subr.mxu0 0.0
    %111 = vmatpush1.msra.mxu0 0.0
    %112 = vmatprep.subr.mxu0 0.0
    %113 = vmatpush1.msra.mxu0 0.0
    %114 = vmatprep.subr.mxu0 0.0
    %115 = vmatpush1.msra.mxu0 0.0
    %116 = vmatprep.subr.mxu0 0.0
    %117 = vmatpush1.msra.mxu0 0.0
    %118 = vmatprep.subr.mxu0 0.0
    %119 = vmatpush1.msra.mxu0 0.0
    %120 = vmatprep.subr.mxu0 0.0
    %121 = vmatpush1.msra.mxu0 0.0
    %122 = vmatprep.subr.mxu0 0.0
    %123 = vmatpush1.msra.mxu0 0.0
    %124 = vmatprep.subr.mxu0 0.0
    %125 = vmatpush1.msra.mxu0 0.0
    %126 = vmatprep.subr.mxu0 0.0
    %127 = vmatpush1.msra.mxu0 0.0
    %128 = vmatprep.subr.mxu0 0.0
    %129 = vmatpush1.msra.mxu0 0.0
    %130 = vmatprep.subr.mxu0 0.0
    %131 = vmatpush1.msra.mxu0 0.0
    %132 = vmatprep.subr.mxu0 0.0
    %133 = vmatpush1.msra.mxu0 0.0
    %134 = vmatprep.subr.mxu0 0.0
    %135 = vmatpush1.msra.mxu0 0.0
    %136 = vmatprep.subr.mxu0 0.0
    %137 = vmatpush1.msra.mxu0 0.0
    %138 = vmatprep.subr.mxu0 0.0
    %139 = vmatpush1.msra.mxu0 0.0
    %140 = vmatprep.subr.mxu0 %v60
    %141 = vmatpush1.msra.mxu0 %v59
    %142 = vmatprep.subr.mxu0 0.0
    %143 = vmatpush2.msra.mxu0 0.0
    %144 = vmatprep.subr.mxu0 0.0
    %145 = vmatpush2.msra.mxu0 0.0
    %146 = vmatprep.subr.mxu0 0.0
    %147 = vmatpush2.msra.mxu0 0.0
    %148 = vmatprep.subr.mxu0 0.0
    %149 = vmatpush2.msra.mxu0 0.0
    %150 = vmatprep.subr.mxu0 0.0
    %151 = vmatpush2.msra.mxu0 0.0
    %152 = vmatprep.subr.mxu0 0.0
    %153 = vmatpush2.msra.mxu0 0.0
    %154 = vmatprep.subr.mxu0 0.0
    %155 = vmatpush2.msra.mxu0 0.0
    %156 = vmatprep.subr.mxu0 0.0
    %157 = vmatpush2.msra.mxu0 0.0
    %158 = vmatprep.subr.mxu0 0.0
    %159 = vmatpush2.msra.mxu0 0.0
    %160 = vmatprep.subr.mxu0 0.0
    %161 = vmatpush2.msra.mxu0 0.0
    %162 = vmatprep.subr.mxu0 0.0
    %163 = vmatpush2.msra.mxu0 0.0
    %164 = vmatprep.subr.mxu0 0.0
    %165 = vmatpush2.msra.mxu0 0.0
    %166 = vmatprep.subr.mxu0 0.0
    %167 = vmatpush2.msra.mxu0 0.0
    %168 = vmatprep.subr.mxu0 0.0
    %169 = vmatpush2.msra.mxu0 0.0
    %170 = vmatprep.subr.mxu0 0.0
    %171 = vmatpush2.msra.mxu0 0.0
    %172 = vmatprep.subr.mxu0 0.0
    %173 = vmatpush2.msra.mxu0 0.0
    %174 = vmatprep.mubr.f32.mxu0 0.0
    %175 = vmatmul.mubr.f32.gmra.mxu0 %v87
    %v176 = vpop.f32.mrf.mxu0
    %v177 = vadd.f32 %v68, %v176
    %v178 = vpop.f32.mrf.mxu0
    %v179 = vadd.f32 %v72, %v178
    %180 = vmatprep.mubr.f32.mxu0 0.0
    %181 = vmatmul.mubr.f32.gmra.mxu0 %v90
    %v182 = vpop.f32.mrf.mxu0
    %v183 = vadd.f32 %v68, %v182
    %v184 = vpop.f32.mrf.mxu0
    %v185 = vadd.f32 %v72, %v184
    %186 = vmatprep.mubr.f32.mxu0 0.0
    %187 = vmatmul.mubr.f32.gmra.mxu0 %v93
    %v188 = vpop.f32.mrf.mxu0
    %v189 = vadd.f32 %v68, %v188
    %v190 = vpop.f32.mrf.mxu0
    %v191 = vadd.f32 %v72, %v190
    %192 = vmatprep.mubr.f32.mxu0 0.0
    %193 = vmatmul.mubr.f32.gmra.mxu0 %v96
    %v194 = vpop.f32.mrf.mxu0
    %v195 = vadd.f32 %v68, %v194
    %v196 = vpop.f32.mrf.mxu0
    %v197 = vadd.f32 %v72, %v196
    %198 = vmatprep.mubr.f32.mxu0 0.0
    %199 = vmatmul.mubr.f32.gmra.mxu0 %v99
    %v200 = vpop.f32.mrf.mxu0
    %v201 = vadd.f32 %v68, %v200
    %v202 = vpop.f32.mrf.mxu0
    %v203 = vadd.f32 %v72, %v202
    %204 = vmatprep.mubr.f32.mxu0 0.0
    %205 = vmatmul.mubr.f32.gmra.mxu0 %v102
    %v206 = vpop.f32.mrf.mxu0
    %v207 = vadd.f32 %v68, %v206
    %v208 = vpop.f32.mrf.mxu0
    %v209 = vadd.f32 %v72, %v208
    %210 = vmatprep.mubr.f32.mxu0 0.0
    %211 = vmatmul.mubr.f32.gmra.mxu0 %v105
    %v212 = vpop.f32.mrf.mxu0
    %v213 = vadd.f32 %v68, %v212
    %v214 = vpop.f32.mrf.mxu0
    %v215 = vadd.f32 %v72, %v214
    %216 = vmatprep.mubr.f32.mxu0 0.0
    %217 = vmatmul.mubr.f32.gmra.mxu0 %v108
    %v218 = vpop.f32.mrf.mxu0
    %v219 = vadd.f32 %v68, %v218
    %v220 = vpop.f32.mrf.mxu0
    %v221 = vadd.f32 %v72, %v220
    %222 = vdwg.mxu0
    %223 = vmatprep.subr.mxu0 0.0
    %224 = vmatpush1.msra.mxu0 0.0
    %225 = vmatprep.subr.mxu0 0.0
    %226 = vmatpush1.msra.mxu0 0.0
    %227 = vmatprep.subr.mxu0 0.0
    %228 = vmatpush1.msra.mxu0 0.0
    %229 = vmatprep.subr.mxu0 0.0
    %230 = vmatpush1.msra.mxu0 0.0
    %231 = vmatprep.subr.mxu0 0.0
    %232 = vmatpush1.msra.mxu0 0.0
    %233 = vmatprep.subr.mxu0 0.0
    %234 = vmatpush1.msra.mxu0 0.0
    %235 = vmatprep.subr.mxu0 0.0
    %236 = vmatpush1.msra.mxu0 0.0
    %237 = vmatprep.subr.mxu0 0.0
    %238 = vmatpush1.msra.mxu0 0.0
    %239 = vmatprep.subr.mxu0 0.0
    %240 = vmatpush1.msra.mxu0 0.0
    %241 = vmatprep.subr.mxu0 0.0
    %242 = vmatpush1.msra.mxu0 0.0
    %243 = vmatprep.subr.mxu0 0.0
    %244 = vmatpush1.msra.mxu0 0.0
    %245 = vmatprep.subr.mxu0 0.0
    %246 = vmatpush1.msra.mxu0 0.0
    %247 = vmatprep.subr.mxu0 0.0
    %248 = vmatpush1.msra.mxu0 0.0
    %249 = vmatprep.subr.mxu0 0.0
    %250 = vmatpush1.msra.mxu0 0.0
    %251 = vmatprep.subr.mxu0 0.0
    %252 = vmatpush1.msra.mxu0 0.0
    %253 = vmatprep.subr.mxu0 %v62
    %254 = vmatpush1.msra.mxu0 %v61
    %255 = vmatprep.subr.mxu0 0.0
    %256 = vmatpush2.msra.mxu0 0.0
    %257 = vmatprep.subr.mxu0 0.0
    %258 = vmatpush2.msra.mxu0 0.0
    %259 = vmatprep.subr.mxu0 0.0
    %260 = vmatpush2.msra.mxu0 0.0
    %261 = vmatprep.subr.mxu0 0.0
    %262 = vmatpush2.msra.mxu0 0.0
    %263 = vmatprep.subr.mxu0 0.0
    %264 = vmatpush2.msra.mxu0 0.0
    %265 = vmatprep.subr.mxu0 0.0
    %266 = vmatpush2.msra.mxu0 0.0
    %267 = vmatprep.subr.mxu0 0.0
    %268 = vmatpush2.msra.mxu0 0.0
    %269 = vmatprep.subr.mxu0 0.0
    %270 = vmatpush2.msra.mxu0 0.0
    %271 = vmatprep.subr.mxu0 0.0
    %272 = vmatpush2.msra.mxu0 0.0
    %273 = vmatprep.subr.mxu0 0.0
    %274 = vmatpush2.msra.mxu0 0.0
    %275 = vmatprep.subr.mxu0 0.0
    %276 = vmatpush2.msra.mxu0 0.0
    %277 = vmatprep.subr.mxu0 0.0
    %278 = vmatpush2.msra.mxu0 0.0
    %279 = vmatprep.subr.mxu0 0.0
    %280 = vmatpush2.msra.mxu0 0.0
    %281 = vmatprep.subr.mxu0 0.0
    %282 = vmatpush2.msra.mxu0 0.0
    %283 = vmatprep.subr.mxu0 0.0
    %284 = vmatpush2.msra.mxu0 0.0
    %285 = vmatprep.subr.mxu0 0.0
    %286 = vmatpush2.msra.mxu0 0.0
    %287 = vmatprep.mubr.f32.mxu0 0.0
    %288 = vmatmul.mubr.f32.gmra.mxu0 %v87
    %v289 = vpop.f32.mrf.mxu0
    %v290 = vadd.f32 %v76, %v289
    %v291 = vpop.f32.mrf.mxu0
    %v292 = vadd.f32 %v80, %v291
    %293 = vmatprep.mubr.f32.mxu0 0.0
    %294 = vmatmul.mubr.f32.gmra.mxu0 %v90
    %v295 = vpop.f32.mrf.mxu0
    %v296 = vadd.f32 %v76, %v295
    %v297 = vpop.f32.mrf.mxu0
    %v298 = vadd.f32 %v80, %v297
    %299 = vmatprep.mubr.f32.mxu0 0.0
    %300 = vmatmul.mubr.f32.gmra.mxu0 %v93
    %v301 = vpop.f32.mrf.mxu0
    %v302 = vadd.f32 %v76, %v301
    %v303 = vpop.f32.mrf.mxu0
    %v304 = vadd.f32 %v80, %v303
    %305 = vmatprep.mubr.f32.mxu0 0.0
    %306 = vmatmul.mubr.f32.gmra.mxu0 %v96
    %v307 = vpop.f32.mrf.mxu0
    %v308 = vadd.f32 %v76, %v307
    %v309 = vpop.f32.mrf.mxu0
    %v310 = vadd.f32 %v80, %v309
    %311 = vmatprep.mubr.f32.mxu0 0.0
    %312 = vmatmul.mubr.f32.gmra.mxu0 %v99
    %v313 = vpop.f32.mrf.mxu0
    %v314 = vadd.f32 %v76, %v313
    %v315 = vpop.f32.mrf.mxu0
    %v316 = vadd.f32 %v80, %v315
    %317 = vmatprep.mubr.f32.mxu0 0.0
    %318 = vmatmul.mubr.f32.gmra.mxu0 %v102
    %v319 = vpop.f32.mrf.mxu0
    %v320 = vadd.f32 %v76, %v319
    %v321 = vpop.f32.mrf.mxu0
    %v322 = vadd.f32 %v80, %v321
    %323 = vmatprep.mubr.f32.mxu0 0.0
    %324 = vmatmul.mubr.f32.gmra.mxu0 %v105
    %v325 = vpop.f32.mrf.mxu0
    %v326 = vadd.f32 %v76, %v325
    %v327 = vpop.f32.mrf.mxu0
    %v328 = vadd.f32 %v80, %v327
    %329 = vmatprep.mubr.f32.mxu0 0.0
    %330 = vmatmul.mubr.f32.gmra.mxu0 %v108
    %v331 = vpop.f32.mrf.mxu0
    %v332 = vadd.f32 %v76, %v331
    %v333 = vpop.f32.mrf.mxu0
    %v334 = vadd.f32 %v80, %v333
    %335 = vdwg.mxu0
    %336 = vst [vmem:[#allocation2] sm:$0xff] %v177
    %337 = vst [vmem:[#allocation2 + $0x8] sm:$0xff] %v179
    %338 = vst [vmem:[#allocation2 + $0x10] sm:$0xff] %v290
    %339 = vst [vmem:[#allocation2 + $0x18] sm:$0xff] %v292
    %340 = vst [vmem:[#allocation2 + $0x20] sm:$0xff] %v183
    %341 = vst [vmem:[#allocation2 + $0x28] sm:$0xff] %v185
    %342 = vst [vmem:[#allocation2 + $0x30] sm:$0xff] %v296
    %343 = vst [vmem:[#allocation2 + $0x38] sm:$0xff] %v298
    %344 = vst [vmem:[#allocation2 + $0x40] sm:$0xff] %v189
    %345 = vst [vmem:[#allocation2 + $0x48] sm:$0xff] %v191
    %346 = vst [vmem:[#allocation2 + $0x50] sm:$0xff] %v302
    %347 = vst [vmem:[#allocation2 + $0x58] sm:$0xff] %v304
    %348 = vst [vmem:[#allocation2 + $0x60] sm:$0xff] %v195
    %349 = vst [vmem:[#allocation2 + $0x68] sm:$0xff] %v197
    %350 = vst [vmem:[#allocation2 + $0x70] sm:$0xff] %v308
    %351 = vst [vmem:[#allocation2 + $0x78] sm:$0xff] %v310
    %352 = vst [vmem:[#allocation2 + $0x80] sm:$0xff] %v201
    %353 = vst [vmem:[#allocation2 + $0x88] sm:$0xff] %v203
    %354 = vst [vmem:[#allocation2 + $0x90] sm:$0xff] %v314
    %355 = vst [vmem:[#allocation2 + $0x98] sm:$0xff] %v316
    %356 = vst [vmem:[#allocation2 + $0xa0] sm:$0xff] %v207
    %357 = vst [vmem:[#allocation2 + $0xa8] sm:$0xff] %v209
    %358 = vst [vmem:[#allocation2 + $0xb0] sm:$0xff] %v320
    %359 = vst [vmem:[#allocation2 + $0xb8] sm:$0xff] %v322
    %360 = vst [vmem:[#allocation2 + $0xc0] sm:$0xff] %v213
    %361 = vst [vmem:[#allocation2 + $0xc8] sm:$0xff] %v215
    %362 = vst [vmem:[#allocation2 + $0xd0] sm:$0xff] %v326
    %363 = vst [vmem:[#allocation2 + $0xd8] sm:$0xff] %v328
    %364 = vst [vmem:[#allocation2 + $0xe0] sm:$0xff] %v219
    %365 = vst [vmem:[#allocation2 + $0xe8] sm:$0xff] %v221
    %366 = vst [vmem:[#allocation2 + $0xf0] sm:$0xff] %v332
    %367 = vst [vmem:[#allocation2 + $0xf8] sm:$0xff] %v334
    %v368 = vld [vmem:[#allocation2] sm:$0xff]
    %v369 = vld [vmem:[#allocation2 + $0x8] sm:$0xff]
    %v370 = vld [vmem:[#allocation2 + $0x10] sm:$0xff]
    %v371 = vld [vmem:[#allocation2 + $0x18] sm:$0xff]
    %v372 = vld [vmem:[#allocation3] sm:$0xff]
    %v373 = vld [vmem:[#allocation3 + $0x8] sm:$0xff]
    %v374 = vld [vmem:[#allocation3 + $0x10] sm:$0xff]
    %v375 = vld [vmem:[#allocation3 + $0x18] sm:$0xff]
    %v376 = vld [vmem:[#allocation3 + $0x20] sm:$0xff]
    %v377 = vld [vmem:[#allocation3 + $0x28] sm:$0xff]
    %v378 = vld [vmem:[#allocation3 + $0x30] sm:$0xff]
    %v379 = vld [vmem:[#allocation3 + $0x38] sm:$0xff]
    %v380 = vld [vmem:[#allocation3 + $0x40] sm:$0xff]
    %v381 = vld [vmem:[#allocation3 + $0x48] sm:$0xff]
    %v382 = vld [vmem:[#allocation3 + $0x50] sm:$0xff]
    %v383 = vld [vmem:[#allocation3 + $0x58] sm:$0xff]
    %v384 = vld [vmem:[#allocation3 + $0x60] sm:$0xff]
    %v385 = vld [vmem:[#allocation3 + $0x68] sm:$0xff]
    %v386 = vld [vmem:[#allocation3 + $0x70] sm:$0xff]
    %v387 = vld [vmem:[#allocation3 + $0x78] sm:$0xff]
    %v388 = vld [vmem:[#allocation3 + $0x80] sm:$0xff]
    %v389 = vld [vmem:[#allocation3 + $0x88] sm:$0xff]
    %v390 = vld [vmem:[#allocation3 + $0x90] sm:$0xff]
    %v391 = vld [vmem:[#allocation3 + $0x98] sm:$0xff]
    %v392 = vld [vmem:[#allocation3 + $0xa0] sm:$0xff]
    %v393 = vld [vmem:[#allocation3 + $0xa8] sm:$0xff]
    %v394 = vld [vmem:[#allocation3 + $0xb0] sm:$0xff]
    %v395 = vld [vmem:[#allocation3 + $0xb8] sm:$0xff]
    %v396 = vld [vmem:[#allocation3 + $0xc0] sm:$0xff]
    %v397 = vld [vmem:[#allocation3 + $0xc8] sm:$0xff]
    %v398 = vld [vmem:[#allocation3 + $0xd0] sm:$0xff]
    %v399 = vld [vmem:[#allocation3 + $0xd8] sm:$0xff]
    %v400 = vld [vmem:[#allocation3 + $0xe0] sm:$0xff]
    %v401 = vld [vmem:[#allocation3 + $0xe8] sm:$0xff]
    %v402 = vld [vmem:[#allocation3 + $0xf0] sm:$0xff]
    %v403 = vld [vmem:[#allocation3 + $0xf8] sm:$0xff]
    %v404 = vld [vmem:[#allocation3 + $0x100] sm:$0xff]
    %v405 = vld [vmem:[#allocation3 + $0x108] sm:$0xff]
    %v406 = vld [vmem:[#allocation3 + $0x110] sm:$0xff]
    %v407 = vld [vmem:[#allocation3 + $0x118] sm:$0xff]
    %v408 = vld [vmem:[#allocation3 + $0x120] sm:$0xff]
    %v409 = vld [vmem:[#allocation3 + $0x128] sm:$0xff]
    %v410 = vld [vmem:[#allocation3 + $0x130] sm:$0xff]
    %v411 = vld [vmem:[#allocation3 + $0x138] sm:$0xff]
    %v412 = vld [vmem:[#allocation3 + $0x140] sm:$0xff]
    %v413 = vld [vmem:[#allocation3 + $0x148] sm:$0xff]
    %v414 = vld [vmem:[#allocation3 + $0x150] sm:$0xff]
    %v415 = vld [vmem:[#allocation3 + $0x158] sm:$0xff]
    %v416 = vld [vmem:[#allocation3 + $0x160] sm:$0xff]
    %v417 = vld [vmem:[#allocation3 + $0x168] sm:$0xff]
    %v418 = vld [vmem:[#allocation3 + $0x170] sm:$0xff]
    %v419 = vld [vmem:[#allocation3 + $0x178] sm:$0xff]
    %v420 = vld [vmem:[#allocation3 + $0x180] sm:$0xff]
    %v421 = vld [vmem:[#allocation3 + $0x188] sm:$0xff]
    %v422 = vld [vmem:[#allocation3 + $0x190] sm:$0xff]
    %v423 = vld [vmem:[#allocation3 + $0x198] sm:$0xff]
    %v424 = vld [vmem:[#allocation3 + $0x1a0] sm:$0xff]
    %v425 = vld [vmem:[#allocation3 + $0x1a8] sm:$0xff]
    %v426 = vld [vmem:[#allocation3 + $0x1b0] sm:$0xff]
    %v427 = vld [vmem:[#allocation3 + $0x1b8] sm:$0xff]
    %v428 = vld [vmem:[#allocation3 + $0x1c0] sm:$0xff]
    %v429 = vld [vmem:[#allocation3 + $0x1c8] sm:$0xff]
    %v430 = vld [vmem:[#allocation3 + $0x1d0] sm:$0xff]
    %v431 = vld [vmem:[#allocation3 + $0x1d8] sm:$0xff]
    %v432 = vld [vmem:[#allocation3 + $0x1e0] sm:$0xff]
    %v433 = vld [vmem:[#allocation3 + $0x1e8] sm:$0xff]
    %v434 = vld [vmem:[#allocation3 + $0x1f0] sm:$0xff]
    %v435 = vld [vmem:[#allocation3 + $0x1f8] sm:$0xff]
    %436 = vmatprep.subr.mxu0 %v433
    %437 = vmatpush1.msra.mxu0 %v432
    %438 = vmatprep.subr.mxu0 %v429
    %439 = vmatpush1.msra.mxu0 %v428
    %440 = vmatprep.subr.mxu0 %v425
    %441 = vmatpush1.msra.mxu0 %v424
    %442 = vmatprep.subr.mxu0 %v421
    %443 = vmatpush1.msra.mxu0 %v420
    %444 = vmatprep.subr.mxu0 %v417
    %445 = vmatpush1.msra.mxu0 %v416
    %446 = vmatprep.subr.mxu0 %v413
    %447 = vmatpush1.msra.mxu0 %v412
    %448 = vmatprep.subr.mxu0 %v409
    %449 = vmatpush1.msra.mxu0 %v408
    %450 = vmatprep.subr.mxu0 %v405
    %451 = vmatpush1.msra.mxu0 %v404
    %452 = vmatprep.subr.mxu0 %v401
    %453 = vmatpush1.msra.mxu0 %v400
    %454 = vmatprep.subr.mxu0 %v397
    %455 = vmatpush1.msra.mxu0 %v396
    %456 = vmatprep.subr.mxu0 %v393
    %457 = vmatpush1.msra.mxu0 %v392
    %458 = vmatprep.subr.mxu0 %v389
    %459 = vmatpush1.msra.mxu0 %v388
    %460 = vmatprep.subr.mxu0 %v385
    %461 = vmatpush1.msra.mxu0 %v384
    %462 = vmatprep.subr.mxu0 %v381
    %463 = vmatpush1.msra.mxu0 %v380
    %464 = vmatprep.subr.mxu0 %v377
    %465 = vmatpush1.msra.mxu0 %v376
    %466 = vmatprep.subr.mxu0 %v373
    %467 = vmatpush1.msra.mxu0 %v372
    %468 = vmatprep.subr.mxu0 0.0
    %469 = vmatpush2.msra.mxu0 0.0
    %470 = vmatprep.subr.mxu0 0.0
    %471 = vmatpush2.msra.mxu0 0.0
    %472 = vmatprep.subr.mxu0 0.0
    %473 = vmatpush2.msra.mxu0 0.0
    %474 = vmatprep.subr.mxu0 0.0
    %475 = vmatpush2.msra.mxu0 0.0
    %476 = vmatprep.subr.mxu0 0.0
    %477 = vmatpush2.msra.mxu0 0.0
    %478 = vmatprep.subr.mxu0 0.0
    %479 = vmatpush2.msra.mxu0 0.0
    %480 = vmatprep.subr.mxu0 0.0
    %481 = vmatpush2.msra.mxu0 0.0
    %482 = vmatprep.subr.mxu0 0.0
    %483 = vmatpush2.msra.mxu0 0.0
    %484 = vmatprep.subr.mxu0 0.0
    %485 = vmatpush2.msra.mxu0 0.0
    %486 = vmatprep.subr.mxu0 0.0
    %487 = vmatpush2.msra.mxu0 0.0
    %488 = vmatprep.subr.mxu0 0.0
    %489 = vmatpush2.msra.mxu0 0.0
    %490 = vmatprep.subr.mxu0 0.0
    %491 = vmatpush2.msra.mxu0 0.0
    %492 = vmatprep.subr.mxu0 0.0
    %493 = vmatpush2.msra.mxu0 0.0
    %494 = vmatprep.subr.mxu0 0.0
    %495 = vmatpush2.msra.mxu0 0.0
    %496 = vmatprep.subr.mxu0 0.0
    %497 = vmatpush2.msra.mxu0 0.0
    %498 = vmatprep.subr.mxu0 0.0
    %499 = vmatpush2.msra.mxu0 0.0
    %500 = vmatprep.mubr.f32.mxu0 0.0
    %501 = vmatmul.mubr.f32.gmra.mxu0 0.0
    %v502 = vpop.f32.mrf.mxu0
    %v503 = vadd.f32 0.0, %v502
    %v504 = vpop.f32.mrf.mxu0
    %v505 = vadd.f32 0.0, %v504
    %506 = vdwg.mxu0
    %507 = vmatprep.subr.mxu0 %v435
    %508 = vmatpush1.msra.mxu0 %v434
    %509 = vmatprep.subr.mxu0 %v431
    %510 = vmatpush1.msra.mxu0 %v430
    %511 = vmatprep.subr.mxu0 %v427
    %512 = vmatpush1.msra.mxu0 %v426
    %513 = vmatprep.subr.mxu0 %v423
    %514 = vmatpush1.msra.mxu0 %v422
    %515 = vmatprep.subr.mxu0 %v419
    %516 = vmatpush1.msra.mxu0 %v418
    %517 = vmatprep.subr.mxu0 %v415
    %518 = vmatpush1.msra.mxu0 %v414
    %519 = vmatprep.subr.mxu0 %v411
    %520 = vmatpush1.msra.mxu0 %v410
    %521 = vmatprep.subr.mxu0 %v407
    %522 = vmatpush1.msra.mxu0 %v406
    %523 = vmatprep.subr.mxu0 %v403
    %524 = vmatpush1.msra.mxu0 %v402
    %525 = vmatprep.subr.mxu0 %v399
    %526 = vmatpush1.msra.mxu0 %v398
    %527 = vmatprep.subr.mxu0 %v395
    %528 = vmatpush1.msra.mxu0 %v394
    %529 = vmatprep.subr.mxu0 %v391
    %530 = vmatpush1.msra.mxu0 %v390
    %531 = vmatprep.subr.mxu0 %v387
    %532 = vmatpush1.msra.mxu0 %v386
    %533 = vmatprep.subr.mxu0 %v383
    %534 = vmatpush1.msra.mxu0 %v382
    %535 = vmatprep.subr.mxu0 %v379
    %536 = vmatpush1.msra.mxu0 %v378
    %537 = vmatprep.subr.mxu0 %v375
    %538 = vmatpush1.msra.mxu0 %v374
    %539 = vmatprep.subr.mxu0 0.0
    %540 = vmatpush2.msra.mxu0 0.0
    %541 = vmatprep.subr.mxu0 0.0
    %542 = vmatpush2.msra.mxu0 0.0
    %543 = vmatprep.subr.mxu0 0.0
    %544 = vmatpush2.msra.mxu0 0.0
    %545 = vmatprep.subr.mxu0 0.0
    %546 = vmatpush2.msra.mxu0 0.0
    %547 = vmatprep.subr.mxu0 0.0
    %548 = vmatpush2.msra.mxu0 0.0
    %549 = vmatprep.subr.mxu0 0.0
    %550 = vmatpush2.msra.mxu0 0.0
    %551 = vmatprep.subr.mxu0 0.0
    %552 = vmatpush2.msra.mxu0 0.0
    %553 = vmatprep.subr.mxu0 0.0
    %554 = vmatpush2.msra.mxu0 0.0
    %555 = vmatprep.subr.mxu0 0.0
    %556 = vmatpush2.msra.mxu0 0.0
    %557 = vmatprep.subr.mxu0 0.0
    %558 = vmatpush2.msra.mxu0 0.0
    %559 = vmatprep.subr.mxu0 0.0
    %560 = vmatpush2.msra.mxu0 0.0
    %561 = vmatprep.subr.mxu0 0.0
    %562 = vmatpush2.msra.mxu0 0.0
    %563 = vmatprep.subr.mxu0 0.0
    %564 = vmatpush2.msra.mxu0 0.0
    %565 = vmatprep.subr.mxu0 0.0
    %566 = vmatpush2.msra.mxu0 0.0
    %567 = vmatprep.subr.mxu0 0.0
    %568 = vmatpush2.msra.mxu0 0.0
    %569 = vmatprep.subr.mxu0 0.0
    %570 = vmatpush2.msra.mxu0 0.0
    %571 = vmatprep.mubr.f32.mxu0 0.0
    %572 = vmatmul.mubr.f32.gmra.mxu0 0.0
    %v573 = vpop.f32.mrf.mxu0
    %v574 = vadd.f32 0.0, %v573
    %v575 = vpop.f32.mrf.mxu0
    %v576 = vadd.f32 0.0, %v575
    %577 = vdwg.mxu0
    %v578 = vadd.f32 %v368, %v503
    %v579 = vadd.f32 %v369, %v505
    %v580 = vadd.f32 %v370, %v574
    %v581 = vadd.f32 %v371, %v576
    %v582 = vxor.u32 %v578, 2147483648
    %v583 = vmul.f32 %v582, 1.442695
    %v584 = vpow.pop %v583
    %v585 = vadd.f32 %v584, 1.0
    %v586 = vrcp.pop %v585
    %v587 = vmul.f32 1.0, %v586
    %v588 = vxor.u32 %v579, 2147483648
    %v589 = vmul.f32 %v588, 1.442695
    %v590 = vpow.pop %v589
    %v591 = vadd.f32 %v590, 1.0
    %v592 = vrcp.pop %v591
    %v593 = vmul.f32 1.0, %v592
    %v594 = vtanh.pop %v580
    %v595 = vxor.u32 %v581, 2147483648
    %v596 = vmul.f32 %v595, 1.442695
    %v597 = vpow.pop %v596
    %v598 = vadd.f32 %v597, 1.0
    %v599 = vrcp.pop %v598
    %v600 = vmul.f32 1.0, %v599
    %v601 = vmul.f32 %v593, 0.0
    %v602 = vmul.f32 %v587, %v594
    %v603 = vadd.f32 %v601, %v602
    %v604 = vtanh.pop %v603
    %v605 = vmul.f32 %v600, %v604
    %v606 = vld [vmem:[#allocation2 + $0x20] sm:$0xff]
    %v607 = vld [vmem:[#allocation2 + $0x28] sm:$0xff]
    %v608 = vld [vmem:[#allocation2 + $0x30] sm:$0xff]
    %v609 = vld [vmem:[#allocation2 + $0x38] sm:$0xff]
    %610 = vmatprep.subr.mxu0 %v433
    %611 = vmatpush1.msra.mxu0 %v432
    %612 = vmatprep.subr.mxu0 %v429
    %613 = vmatpush1.msra.mxu0 %v428
    %614 = vmatprep.subr.mxu0 %v425
    %615 = vmatpush1.msra.mxu0 %v424
    %616 = vmatprep.subr.mxu0 %v421
    %617 = vmatpush1.msra.mxu0 %v420
    %618 = vmatprep.subr.mxu0 %v417
    %619 = vmatpush1.msra.mxu0 %v416
    %620 = vmatprep.subr.mxu0 %v413
    %621 = vmatpush1.msra.mxu0 %v412
    %622 = vmatprep.subr.mxu0 %v409
    %623 = vmatpush1.msra.mxu0 %v408
    %624 = vmatprep.subr.mxu0 %v405
    %625 = vmatpush1.msra.mxu0 %v404
    %626 = vmatprep.subr.mxu0 %v401
    %627 = vmatpush1.msra.mxu0 %v400
    %628 = vmatprep.subr.mxu0 %v397
    %629 = vmatpush1.msra.mxu0 %v396
    %630 = vmatprep.subr.mxu0 %v393
    %631 = vmatpush1.msra.mxu0 %v392
    %632 = vmatprep.subr.mxu0 %v389
    %633 = vmatpush1.msra.mxu0 %v388
    %634 = vmatprep.subr.mxu0 %v385
    %635 = vmatpush1.msra.mxu0 %v384
    %636 = vmatprep.subr.mxu0 %v381
    %637 = vmatpush1.msra.mxu0 %v380
    %638 = vmatprep.subr.mxu0 %v377
    %639 = vmatpush1.msra.mxu0 %v376
    %640 = vmatprep.subr.mxu0 %v373
    %641 = vmatpush1.msra.mxu0 %v372
    %642 = vmatprep.subr.mxu0 0.0
    %643 = vmatpush2.msra.mxu0 0.0
    %644 = vmatprep.subr.mxu0 0.0
    %645 = vmatpush2.msra.mxu0 0.0
    %646 = vmatprep.subr.mxu0 0.0
    %647 = vmatpush2.msra.mxu0 0.0
    %648 = vmatprep.subr.mxu0 0.0
    %649 = vmatpush2.msra.mxu0 0.0
    %650 = vmatprep.subr.mxu0 0.0
    %651 = vmatpush2.msra.mxu0 0.0
    %652 = vmatprep.subr.mxu0 0.0
    %653 = vmatpush2.msra.mxu0 0.0
    %654 = vmatprep.subr.mxu0 0.0
    %655 = vmatpush2.msra.mxu0 0.0
    %656 = vmatprep.subr.mxu0 0.0
    %657 = vmatpush2.msra.mxu0 0.0
    %658 = vmatprep.subr.mxu0 0.0
    %659 = vmatpush2.msra.mxu0 0.0
    %660 = vmatprep.subr.mxu0 0.0
    %661 = vmatpush2.msra.mxu0 0.0
    %662 = vmatprep.subr.mxu0 0.0
    %663 = vmatpush2.msra.mxu0 0.0
    %664 = vmatprep.subr.mxu0 0.0
    %665 = vmatpush2.msra.mxu0 0.0
    %666 = vmatprep.subr.mxu0 0.0
    %667 = vmatpush2.msra.mxu0 0.0
    %668 = vmatprep.subr.mxu0 0.0
    %669 = vmatpush2.msra.mxu0 0.0
    %670 = vmatprep.subr.mxu0 0.0
    %671 = vmatpush2.msra.mxu0 0.0
    %672 = vmatprep.subr.mxu0 0.0
    %673 = vmatpush2.msra.mxu0 0.0
    %674 = vmatprep.mubr.f32.mxu0 0.0
    %675 = vmatmul.mubr.f32.gmra.mxu0 %v605
    %v676 = vpop.f32.mrf.mxu0
    %v677 = vadd.f32 0.0, %v676
    %v678 = vpop.f32.mrf.mxu0
    %v679 = vadd.f32 0.0, %v678
    %680 = vdwg.mxu0
    %681 = vmatprep.subr.mxu0 %v435
    %682 = vmatpush1.msra.mxu0 %v434
    %683 = vmatprep.subr.mxu0 %v431
    %684 = vmatpush1.msra.mxu0 %v430
    %685 = vmatprep.subr.mxu0 %v427
    %686 = vmatpush1.msra.mxu0 %v426
    %687 = vmatprep.subr.mxu0 %v423
    %688 = vmatpush1.msra.mxu0 %v422
    %689 = vmatprep.subr.mxu0 %v419
    %690 = vmatpush1.msra.mxu0 %v418
    %691 = vmatprep.subr.mxu0 %v415
    %692 = vmatpush1.msra.mxu0 %v414
    %693 = vmatprep.subr.mxu0 %v411
    %694 = vmatpush1.msra.mxu0 %v410
    %695 = vmatprep.subr.mxu0 %v407
    %696 = vmatpush1.msra.mxu0 %v406
    %697 = vmatprep.subr.mxu0 %v403
    %698 = vmatpush1.msra.mxu0 %v402
    %699 = vmatprep.subr.mxu0 %v399
    %700 = vmatpush1.msra.mxu0 %v398
    %701 = vmatprep.subr.mxu0 %v395
    %702 = vmatpush1.msra.mxu0 %v394
    %703 = vmatprep.subr.mxu0 %v391
    %704 = vmatpush1.msra.mxu0 %v390
    %705 = vmatprep.subr.mxu0 %v387
    %706 = vmatpush1.msra.mxu0 %v386
    %707 = vmatprep.subr.mxu0 %v383
    %708 = vmatpush1.msra.mxu0 %v382
    %709 = vmatprep.subr.mxu0 %v379
    %710 = vmatpush1.msra.mxu0 %v378
    %711 = vmatprep.subr.mxu0 %v375
    %712 = vmatpush1.msra.mxu0 %v374
    %713 = vmatprep.subr.mxu0 0.0
    %714 = vmatpush2.msra.mxu0 0.0
    %715 = vmatprep.subr.mxu0 0.0
    %716 = vmatpush2.msra.mxu0 0.0
    %717 = vmatprep.subr.mxu0 0.0
    %718 = vmatpush2.msra.mxu0 0.0
    %719 = vmatprep.subr.mxu0 0.0
    %720 = vmatpush2.msra.mxu0 0.0
    %721 = vmatprep.subr.mxu0 0.0
    %722 = vmatpush2.msra.mxu0 0.0
    %723 = vmatprep.subr.mxu0 0.0
    %724 = vmatpush2.msra.mxu0 0.0
    %725 = vmatprep.subr.mxu0 0.0
    %726 = vmatpush2.msra.mxu0 0.0
    %727 = vmatprep.subr.mxu0 0.0
    %728 = vmatpush2.msra.mxu0 0.0
    %729 = vmatprep.subr.mxu0 0.0
    %730 = vmatpush2.msra.mxu0 0.0
    %731 = vmatprep.subr.mxu0 0.0
    %732 = vmatpush2.msra.mxu0 0.0
    %733 = vmatprep.subr.mxu0 0.0
    %734 = vmatpush2.msra.mxu0 0.0
    %735 = vmatprep.subr.mxu0 0.0
    %736 = vmatpush2.msra.mxu0 0.0
    %737 = vmatprep.subr.mxu0 0.0
    %738 = vmatpush2.msra.mxu0 0.0
    %739 = vmatprep.subr.mxu0 0.0
    %740 = vmatpush2.msra.mxu0 0.0
    %741 = vmatprep.subr.mxu0 0.0
    %742 = vmatpush2.msra.mxu0 0.0
    %743 = vmatprep.subr.mxu0 0.0
    %744 = vmatpush2.msra.mxu0 0.0
    %745 = vmatprep.mubr.f32.mxu0 0.0
    %746 = vmatmul.mubr.f32.gmra.mxu0 %v605
    %v747 = vpop.f32.mrf.mxu0
    %v748 = vadd.f32 0.0, %v747
    %v749 = vpop.f32.mrf.mxu0
    %v750 = vadd.f32 0.0, %v749
    %751 = vdwg.mxu0
    %v752 = vadd.f32 %v606, %v677
    %v753 = vadd.f32 %v607, %v679
    %v754 = vadd.f32 %v608, %v748
    %v755 = vadd.f32 %v609, %v750
    %v756 = vxor.u32 %v752, 2147483648
    %v757 = vmul.f32 %v756, 1.442695
    %v758 = vpow.pop %v757
    %v759 = vadd.f32 %v758, 1.0
    %v760 = vrcp.pop %v759
    %v761 = vmul.f32 1.0, %v760
    %v762 = vxor.u32 %v753, 2147483648
    %v763 = vmul.f32 %v762, 1.442695
    %v764 = vpow.pop %v763
    %v765 = vadd.f32 %v764, 1.0
    %v766 = vrcp.pop %v765
    %v767 = vmul.f32 1.0, %v766
    %v768 = vtanh.pop %v754
    %v769 = vxor.u32 %v755, 2147483648
    %v770 = vmul.f32 %v769, 1.442695
    %v771 = vpow.pop %v770
    %v772 = vadd.f32 %v771, 1.0
    %v773 = vrcp.pop %v772
    %v774 = vmul.f32 1.0, %v773
    %v775 = vmul.f32 %v767, %v603
    %v776 = vmul.f32 %v761, %v768
    %v777 = vadd.f32 %v775, %v776
    %v778 = vtanh.pop %v777
    %v779 = vmul.f32 %v774, %v778
    %v780 = vld [vmem:[#allocation2 + $0x40] sm:$0xff]
    %v781 = vld [vmem:[#allocation2 + $0x48] sm:$0xff]
    %v782 = vld [vmem:[#allocation2 + $0x50] sm:$0xff]
    %v783 = vld [vmem:[#allocation2 + $0x58] sm:$0xff]
    %784 = vmatprep.subr.mxu0 %v433
    %785 = vmatpush1.msra.mxu0 %v432
    %786 = vmatprep.subr.mxu0 %v429
    %787 = vmatpush1.msra.mxu0 %v428
    %788 = vmatprep.subr.mxu0 %v425
    %789 = vmatpush1.msra.mxu0 %v424
    %790 = vmatprep.subr.mxu0 %v421
    %791 = vmatpush1.msra.mxu0 %v420
    %792 = vmatprep.subr.mxu0 %v417
    %793 = vmatpush1.msra.mxu0 %v416
    %794 = vmatprep.subr.mxu0 %v413
    %795 = vmatpush1.msra.mxu0 %v412
    %796 = vmatprep.subr.mxu0 %v409
    %797 = vmatpush1.msra.mxu0 %v408
    %798 = vmatprep.subr.mxu0 %v405
    %799 = vmatpush1.msra.mxu0 %v404
    %800 = vmatprep.subr.mxu0 %v401
    %801 = vmatpush1.msra.mxu0 %v400
    %802 = vmatprep.subr.mxu0 %v397
    %803 = vmatpush1.msra.mxu0 %v396
    %804 = vmatprep.subr.mxu0 %v393
    %805 = vmatpush1.msra.mxu0 %v392
    %806 = vmatprep.subr.mxu0 %v389
    %807 = vmatpush1.msra.mxu0 %v388
    %808 = vmatprep.subr.mxu0 %v385
    %809 = vmatpush1.msra.mxu0 %v384
    %810 = vmatprep.subr.mxu0 %v381
    %811 = vmatpush1.msra.mxu0 %v380
    %812 = vmatprep.subr.mxu0 %v377
    %813 = vmatpush1.msra.mxu0 %v376
    %814 = vmatprep.subr.mxu0 %v373
    %815 = vmatpush1.msra.mxu0 %v372
    %816 = vmatprep.subr.mxu0 0.0
    %817 = vmatpush2.msra.mxu0 0.0
    %818 = vmatprep.subr.mxu0 0.0
    %819 = vmatpush2.msra.mxu0 0.0
    %820 = vmatprep.subr.mxu0 0.0
    %821 = vmatpush2.msra.mxu0 0.0
    %822 = vmatprep.subr.mxu0 0.0
    %823 = vmatpush2.msra.mxu0 0.0
    %824 = vmatprep.subr.mxu0 0.0
    %825 = vmatpush2.msra.mxu0 0.0
    %826 = vmatprep.subr.mxu0 0.0
    %827 = vmatpush2.msra.mxu0 0.0
    %828 = vmatprep.subr.mxu0 0.0
    %829 = vmatpush2.msra.mxu0 0.0
    %830 = vmatprep.subr.mxu0 0.0
    %831 = vmatpush2.msra.mxu0 0.0
    %832 = vmatprep.subr.mxu0 0.0
    %833 = vmatpush2.msra.mxu0 0.0
    %834 = vmatprep.subr.mxu0 0.0
    %835 = vmatpush2.msra.mxu0 0.0
    %836 = vmatprep.subr.mxu0 0.0
    %837 = vmatpush2.msra.mxu0 0.0
    %838 = vmatprep.subr.mxu0 0.0
    %839 = vmatpush2.msra.mxu0 0.0
    %840 = vmatprep.subr.mxu0 0.0
    %841 = vmatpush2.msra.mxu0 0.0
    %842 = vmatprep.subr.mxu0 0.0
    %843 = vmatpush2.msra.mxu0 0.0
    %844 = vmatprep.subr.mxu0 0.0
    %845 = vmatpush2.msra.mxu0 0.0
    %846 = vmatprep.subr.mxu0 0.0
    %847 = vmatpush2.msra.mxu0 0.0
    %848 = vmatprep.mubr.f32.mxu0 0.0
    %849 = vmatmul.mubr.f32.gmra.mxu0 %v779
    %v850 = vpop.f32.mrf.mxu0
    %v851 = vadd.f32 0.0, %v850
    %v852 = vpop.f32.mrf.mxu0
    %v853 = vadd.f32 0.0, %v852
    %854 = vdwg.mxu0
    %855 = vmatprep.subr.mxu0 %v435
    %856 = vmatpush1.msra.mxu0 %v434
    %857 = vmatprep.subr.mxu0 %v431
    %858 = vmatpush1.msra.mxu0 %v430
    %859 = vmatprep.subr.mxu0 %v427
    %860 = vmatpush1.msra.mxu0 %v426
    %861 = vmatprep.subr.mxu0 %v423
    %862 = vmatpush1.msra.mxu0 %v422
    %863 = vmatprep.subr.mxu0 %v419
    %864 = vmatpush1.msra.mxu0 %v418
    %865 = vmatprep.subr.mxu0 %v415
    %866 = vmatpush1.msra.mxu0 %v414
    %867 = vmatprep.subr.mxu0 %v411
    %868 = vmatpush1.msra.mxu0 %v410
    %869 = vmatprep.subr.mxu0 %v407
    %870 = vmatpush1.msra.mxu0 %v406
    %871 = vmatprep.subr.mxu0 %v403
    %872 = vmatpush1.msra.mxu0 %v402
    %873 = vmatprep.subr.mxu0 %v399
    %874 = vmatpush1.msra.mxu0 %v398
    %875 = vmatprep.subr.mxu0 %v395
    %876 = vmatpush1.msra.mxu0 %v394
    %877 = vmatprep.subr.mxu0 %v391
    %878 = vmatpush1.msra.mxu0 %v390
    %879 = vmatprep.subr.mxu0 %v387
    %880 = vmatpush1.msra.mxu0 %v386
    %881 = vmatprep.subr.mxu0 %v383
    %882 = vmatpush1.msra.mxu0 %v382
    %883 = vmatprep.subr.mxu0 %v379
    %884 = vmatpush1.msra.mxu0 %v378
    %885 = vmatprep.subr.mxu0 %v375
    %886 = vmatpush1.msra.mxu0 %v374
    %887 = vmatprep.subr.mxu0 0.0
    %888 = vmatpush2.msra.mxu0 0.0
    %889 = vmatprep.subr.mxu0 0.0
    %890 = vmatpush2.msra.mxu0 0.0
    %891 = vmatprep.subr.mxu0 0.0
    %892 = vmatpush2.msra.mxu0 0.0
    %893 = vmatprep.subr.mxu0 0.0
    %894 = vmatpush2.msra.mxu0 0.0
    %895 = vmatprep.subr.mxu0 0.0
    %896 = vmatpush2.msra.mxu0 0.0
    %897 = vmatprep.subr.mxu0 0.0
    %898 = vmatpush2.msra.mxu0 0.0
    %899 = vmatprep.subr.mxu0 0.0
    %900 = vmatpush2.msra.mxu0 0.0
    %901 = vmatprep.subr.mxu0 0.0
    %902 = vmatpush2.msra.mxu0 0.0
    %903 = vmatprep.subr.mxu0 0.0
    %904 = vmatpush2.msra.mxu0 0.0
    %905 = vmatprep.subr.mxu0 0.0
    %906 = vmatpush2.msra.mxu0 0.0
    %907 = vmatprep.subr.mxu0 0.0
    %908 = vmatpush2.msra.mxu0 0.0
    %909 = vmatprep.subr.mxu0 0.0
    %910 = vmatpush2.msra.mxu0 0.0
    %911 = vmatprep.subr.mxu0 0.0
    %912 = vmatpush2.msra.mxu0 0.0
    %913 = vmatprep.subr.mxu0 0.0
    %914 = vmatpush2.msra.mxu0 0.0
    %915 = vmatprep.subr.mxu0 0.0
    %916 = vmatpush2.msra.mxu0 0.0
    %917 = vmatprep.subr.mxu0 0.0
    %918 = vmatpush2.msra.mxu0 0.0
    %919 = vmatprep.mubr.f32.mxu0 0.0
    %920 = vmatmul.mubr.f32.gmra.mxu0 %v779
    %v921 = vpop.f32.mrf.mxu0
    %v922 = vadd.f32 0.0, %v921
    %v923 = vpop.f32.mrf.mxu0
    %v924 = vadd.f32 0.0, %v923
    %925 = vdwg.mxu0
    %v926 = vadd.f32 %v780, %v851
    %v927 = vadd.f32 %v781, %v853
    %v928 = vadd.f32 %v782, %v922
    %v929 = vadd.f32 %v783, %v924
    %v930 = vxor.u32 %v926, 2147483648
    %v931 = vmul.f32 %v930, 1.442695
    %v932 = vpow.pop %v931
    %v933 = vadd.f32 %v932, 1.0
    %v934 = vrcp.pop %v933
    %v935 = vmul.f32 1.0, %v934
    %v936 = vxor.u32 %v927, 2147483648
    %v937 = vmul.f32 %v936, 1.442695
    %v938 = vpow.pop %v937
    %v939 = vadd.f32 %v938, 1.0
    %v940 = vrcp.pop %v939
    %v941 = vmul.f32 1.0, %v940
    %v942 = vtanh.pop %v928
    %v943 = vxor.u32 %v929, 2147483648
    %v944 = vmul.f32 %v943, 1.442695
    %v945 = vpow.pop %v944
    %v946 = vadd.f32 %v945, 1.0
    %v947 = vrcp.pop %v946
    %v948 = vmul.f32 1.0, %v947
    %v949 = vmul.f32 %v941, %v777
    %v950 = vmul.f32 %v935, %v942
    %v951 = vadd.f32 %v949, %v950
    %v952 = vtanh.pop %v951
    %v953 = vmul.f32 %v948, %v952
    %v954 = vld [vmem:[#allocation2 + $0x60] sm:$0xff]
    %v955 = vld [vmem:[#allocation2 + $0x68] sm:$0xff]
    %v956 = vld [vmem:[#allocation2 + $0x70] sm:$0xff]
    %v957 = vld [vmem:[#allocation2 + $0x78] sm:$0xff]
    %958 = vmatprep.subr.mxu0 %v433
    %959 = vmatpush1.msra.mxu0 %v432
    %960 = vmatprep.subr.mxu0 %v429
    %961 = vmatpush1.msra.mxu0 %v428
    %962 = vmatprep.subr.mxu0 %v425
    %963 = vmatpush1.msra.mxu0 %v424
    %964 = vmatprep.subr.mxu0 %v421
    %965 = vmatpush1.msra.mxu0 %v420
    %966 = vmatprep.subr.mxu0 %v417
    %967 = vmatpush1.msra.mxu0 %v416
    %968 = vmatprep.subr.mxu0 %v413
    %969 = vmatpush1.msra.mxu0 %v412
    %970 = vmatprep.subr.mxu0 %v409
    %971 = vmatpush1.msra.mxu0 %v408
    %972 = vmatprep.subr.mxu0 %v405
    %973 = vmatpush1.msra.mxu0 %v404
    %974 = vmatprep.subr.mxu0 %v401
    %975 = vmatpush1.msra.mxu0 %v400
    %976 = vmatprep.subr.mxu0 %v397
    %977 = vmatpush1.msra.mxu0 %v396
    %978 = vmatprep.subr.mxu0 %v393
    %979 = vmatpush1.msra.mxu0 %v392
    %980 = vmatprep.subr.mxu0 %v389
    %981 = vmatpush1.msra.mxu0 %v388
    %982 = vmatprep.subr.mxu0 %v385
    %983 = vmatpush1.msra.mxu0 %v384
    %984 = vmatprep.subr.mxu0 %v381
    %985 = vmatpush1.msra.mxu0 %v380
    %986 = vmatprep.subr.mxu0 %v377
    %987 = vmatpush1.msra.mxu0 %v376
    %988 = vmatprep.subr.mxu0 %v373
    %989 = vmatpush1.msra.mxu0 %v372
    %990 = vmatprep.subr.mxu0 0.0
    %991 = vmatpush2.msra.mxu0 0.0
    %992 = vmatprep.subr.mxu0 0.0
    %993 = vmatpush2.msra.mxu0 0.0
    %994 = vmatprep.subr.mxu0 0.0
    %995 = vmatpush2.msra.mxu0 0.0
    %996 = vmatprep.subr.mxu0 0.0
    %997 = vmatpush2.msra.mxu0 0.0
    %998 = vmatprep.subr.mxu0 0.0
    %999 = vmatpush2.msra.mxu0 0.0
    %1000 = vmatprep.subr.mxu0 0.0
    %1001 = vmatpush2.msra.mxu0 0.0
    %1002 = vmatprep.subr.mxu0 0.0
    %1003 = vmatpush2.msra.mxu0 0.0
    %1004 = vmatprep.subr.mxu0 0.0
    %1005 = vmatpush2.msra.mxu0 0.0
    %1006 = vmatprep.subr.mxu0 0.0
    %1007 = vmatpush2.msra.mxu0 0.0
    %1008 = vmatprep.subr.mxu0 0.0
    %1009 = vmatpush2.msra.mxu0 0.0
    %1010 = vmatprep.subr.mxu0 0.0
    %1011 = vmatpush2.msra.mxu0 0.0
    %1012 = vmatprep.subr.mxu0 0.0
    %1013 = vmatpush2.msra.mxu0 0.0
    %1014 = vmatprep.subr.mxu0 0.0
    %1015 = vmatpush2.msra.mxu0 0.0
    %1016 = vmatprep.subr.mxu0 0.0
    %1017 = vmatpush2.msra.mxu0 0.0
    %1018 = vmatprep.subr.mxu0 0.0
    %1019 = vmatpush2.msra.mxu0 0.0
    %1020 = vmatprep.subr.mxu0 0.0
    %1021 = vmatpush2.msra.mxu0 0.0
    %1022 = vmatprep.mubr.f32.mxu0 0.0
    %1023 = vmatmul.mubr.f32.gmra.mxu0 %v953
    %v1024 = vpop.f32.mrf.mxu0
    %v1025 = vadd.f32 0.0, %v1024
    %v1026 = vpop.f32.mrf.mxu0
    %v1027 = vadd.f32 0.0, %v1026
    %1028 = vdwg.mxu0
    %1029 = vmatprep.subr.mxu0 %v435
    %1030 = vmatpush1.msra.mxu0 %v434
    %1031 = vmatprep.subr.mxu0 %v431
    %1032 = vmatpush1.msra.mxu0 %v430
    %1033 = vmatprep.subr.mxu0 %v427
    %1034 = vmatpush1.msra.mxu0 %v426
    %1035 = vmatprep.subr.mxu0 %v423
    %1036 = vmatpush1.msra.mxu0 %v422
    %1037 = vmatprep.subr.mxu0 %v419
    %1038 = vmatpush1.msra.mxu0 %v418
    %1039 = vmatprep.subr.mxu0 %v415
    %1040 = vmatpush1.msra.mxu0 %v414
    %1041 = vmatprep.subr.mxu0 %v411
    %1042 = vmatpush1.msra.mxu0 %v410
    %1043 = vmatprep.subr.mxu0 %v407
    %1044 = vmatpush1.msra.mxu0 %v406
    %1045 = vmatprep.subr.mxu0 %v403
    %1046 = vmatpush1.msra.mxu0 %v402
    %1047 = vmatprep.subr.mxu0 %v399
    %1048 = vmatpush1.msra.mxu0 %v398
    %1049 = vmatprep.subr.mxu0 %v395
    %1050 = vmatpush1.msra.mxu0 %v394
    %1051 = vmatprep.subr.mxu0 %v391
    %1052 = vmatpush1.msra.mxu0 %v390
    %1053 = vmatprep.subr.mxu0 %v387
    %1054 = vmatpush1.msra.mxu0 %v386
    %1055 = vmatprep.subr.mxu0 %v383
    %1056 = vmatpush1.msra.mxu0 %v382
    %1057 = vmatprep.subr.mxu0 %v379
    %1058 = vmatpush1.msra.mxu0 %v378
    %1059 = vmatprep.subr.mxu0 %v375
    %1060 = vmatpush1.msra.mxu0 %v374
    %1061 = vmatprep.subr.mxu0 0.0
    %1062 = vmatpush2.msra.mxu0 0.0
    %1063 = vmatprep.subr.mxu0 0.0
    %1064 = vmatpush2.msra.mxu0 0.0
    %1065 = vmatprep.subr.mxu0 0.0
    %1066 = vmatpush2.msra.mxu0 0.0
    %1067 = vmatprep.subr.mxu0 0.0
    %1068 = vmatpush2.msra.mxu0 0.0
    %1069 = vmatprep.subr.mxu0 0.0
    %1070 = vmatpush2.msra.mxu0 0.0
    %1071 = vmatprep.subr.mxu0 0.0
    %1072 = vmatpush2.msra.mxu0 0.0
    %1073 = vmatprep.subr.mxu0 0.0
    %1074 = vmatpush2.msra.mxu0 0.0
    %1075 = vmatprep.subr.mxu0 0.0
    %1076 = vmatpush2.msra.mxu0 0.0
    %1077 = vmatprep.subr.mxu0 0.0
    %1078 = vmatpush2.msra.mxu0 0.0
    %1079 = vmatprep.subr.mxu0 0.0
    %1080 = vmatpush2.msra.mxu0 0.0
    %1081 = vmatprep.subr.mxu0 0.0
    %1082 = vmatpush2.msra.mxu0 0.0
    %1083 = vmatprep.subr.mxu0 0.0
    %1084 = vmatpush2.msra.mxu0 0.0
    %1085 = vmatprep.subr.mxu0 0.0
    %1086 = vmatpush2.msra.mxu0 0.0
    %1087 = vmatprep.subr.mxu0 0.0
    %1088 = vmatpush2.msra.mxu0 0.0
    %1089 = vmatprep.subr.mxu0 0.0
    %1090 = vmatpush2.msra.mxu0 0.0
    %1091 = vmatprep.subr.mxu0 0.0
    %1092 = vmatpush2.msra.mxu0 0.0
    %1093 = vmatprep.mubr.f32.mxu0 0.0
    %1094 = vmatmul.mubr.f32.gmra.mxu0 %v953
    %v1095 = vpop.f32.mrf.mxu0
    %v1096 = vadd.f32 0.0, %v1095
    %v1097 = vpop.f32.mrf.mxu0
    %v1098 = vadd.f32 0.0, %v1097
    %1099 = vdwg.mxu0
    %v1100 = vadd.f32 %v954, %v1025
    %v1101 = vadd.f32 %v955, %v1027
    %v1102 = vadd.f32 %v956, %v1096
    %v1103 = vadd.f32 %v957, %v1098
    %v1104 = vxor.u32 %v1100, 2147483648
    %v1105 = vmul.f32 %v1104, 1.442695
    %v1106 = vpow.pop %v1105
    %v1107 = vadd.f32 %v1106, 1.0
    %v1108 = vrcp.pop %v1107
    %v1109 = vmul.f32 1.0, %v1108
    %v1110 = vxor.u32 %v1101, 2147483648
    %v1111 = vmul.f32 %v1110, 1.442695
    %v1112 = vpow.pop %v1111
    %v1113 = vadd.f32 %v1112, 1.0
    %v1114 = vrcp.pop %v1113
    %v1115 = vmul.f32 1.0, %v1114
    %v1116 = vtanh.pop %v1102
    %v1117 = vxor.u32 %v1103, 2147483648
    %v1118 = vmul.f32 %v1117, 1.442695
    %v1119 = vpow.pop %v1118
    %v1120 = vadd.f32 %v1119, 1.0
    %v1121 = vrcp.pop %v1120
    %v1122 = vmul.f32 1.0, %v1121
    %v1123 = vmul.f32 %v1115, %v951
    %v1124 = vmul.f32 %v1109, %v1116
    %v1125 = vadd.f32 %v1123, %v1124
    %v1126 = vtanh.pop %v1125
    %v1127 = vmul.f32 %v1122, %v1126
    %v1128 = vld [vmem:[#allocation2 + $0x80] sm:$0xff]
    %v1129 = vld [vmem:[#allocation2 + $0x88] sm:$0xff]
    %v1130 = vld [vmem:[#allocation2 + $0x90] sm:$0xff]
    %v1131 = vld [vmem:[#allocation2 + $0x98] sm:$0xff]
    %1132 = vmatprep.subr.mxu0 %v433
    %1133 = vmatpush1.msra.mxu0 %v432
    %1134 = vmatprep.subr.mxu0 %v429
    %1135 = vmatpush1.msra.mxu0 %v428
    %1136 = vmatprep.subr.mxu0 %v425
    %1137 = vmatpush1.msra.mxu0 %v424
    %1138 = vmatprep.subr.mxu0 %v421
    %1139 = vmatpush1.msra.mxu0 %v420
    %1140 = vmatprep.subr.mxu0 %v417
    %1141 = vmatpush1.msra.mxu0 %v416
    %1142 = vmatprep.subr.mxu0 %v413
    %1143 = vmatpush1.msra.mxu0 %v412
    %1144 = vmatprep.subr.mxu0 %v409
    %1145 = vmatpush1.msra.mxu0 %v408
    %1146 = vmatprep.subr.mxu0 %v405
    %1147 = vmatpush1.msra.mxu0 %v404
    %1148 = vmatprep.subr.mxu0 %v401
    %1149 = vmatpush1.msra.mxu0 %v400
    %1150 = vmatprep.subr.mxu0 %v397
    %1151 = vmatpush1.msra.mxu0 %v396
    %1152 = vmatprep.subr.mxu0 %v393
    %1153 = vmatpush1.msra.mxu0 %v392
    %1154 = vmatprep.subr.mxu0 %v389
    %1155 = vmatpush1.msra.mxu0 %v388
    %1156 = vmatprep.subr.mxu0 %v385
    %1157 = vmatpush1.msra.mxu0 %v384
    %1158 = vmatprep.subr.mxu0 %v381
    %1159 = vmatpush1.msra.mxu0 %v380
    %1160 = vmatprep.subr.mxu0 %v377
    %1161 = vmatpush1.msra.mxu0 %v376
    %1162 = vmatprep.subr.mxu0 %v373
    %1163 = vmatpush1.msra.mxu0 %v372
    %1164 = vmatprep.subr.mxu0 0.0
    %1165 = vmatpush2.msra.mxu0 0.0
    %1166 = vmatprep.subr.mxu0 0.0
    %1167 = vmatpush2.msra.mxu0 0.0
    %1168 = vmatprep.subr.mxu0 0.0
    %1169 = vmatpush2.msra.mxu0 0.0
    %1170 = vmatprep.subr.mxu0 0.0
    %1171 = vmatpush2.msra.mxu0 0.0
    %1172 = vmatprep.subr.mxu0 0.0
    %1173 = vmatpush2.msra.mxu0 0.0
    %1174 = vmatprep.subr.mxu0 0.0
    %1175 = vmatpush2.msra.mxu0 0.0
    %1176 = vmatprep.subr.mxu0 0.0
    %1177 = vmatpush2.msra.mxu0 0.0
    %1178 = vmatprep.subr.mxu0 0.0
    %1179 = vmatpush2.msra.mxu0 0.0
    %1180 = vmatprep.subr.mxu0 0.0
    %1181 = vmatpush2.msra.mxu0 0.0
    %1182 = vmatprep.subr.mxu0 0.0
    %1183 = vmatpush2.msra.mxu0 0.0
    %1184 = vmatprep.subr.mxu0 0.0
    %1185 = vmatpush2.msra.mxu0 0.0
    %1186 = vmatprep.subr.mxu0 0.0
    %1187 = vmatpush2.msra.mxu0 0.0
    %1188 = vmatprep.subr.mxu0 0.0
    %1189 = vmatpush2.msra.mxu0 0.0
    %1190 = vmatprep.subr.mxu0 0.0
    %1191 = vmatpush2.msra.mxu0 0.0
    %1192 = vmatprep.subr.mxu0 0.0
    %1193 = vmatpush2.msra.mxu0 0.0
    %1194 = vmatprep.subr.mxu0 0.0
    %1195 = vmatpush2.msra.mxu0 0.0
    %1196 = vmatprep.mubr.f32.mxu0 0.0
    %1197 = vmatmul.mubr.f32.gmra.mxu0 %v1127
    %v1198 = vpop.f32.mrf.mxu0
    %v1199 = vadd.f32 0.0, %v1198
    %v1200 = vpop.f32.mrf.mxu0
    %v1201 = vadd.f32 0.0, %v1200
    %1202 = vdwg.mxu0
    %1203 = vmatprep.subr.mxu0 %v435
    %1204 = vmatpush1.msra.mxu0 %v434
    %1205 = vmatprep.subr.mxu0 %v431
    %1206 = vmatpush1.msra.mxu0 %v430
    %1207 = vmatprep.subr.mxu0 %v427
    %1208 = vmatpush1.msra.mxu0 %v426
    %1209 = vmatprep.subr.mxu0 %v423
    %1210 = vmatpush1.msra.mxu0 %v422
    %1211 = vmatprep.subr.mxu0 %v419
    %1212 = vmatpush1.msra.mxu0 %v418
    %1213 = vmatprep.subr.mxu0 %v415
    %1214 = vmatpush1.msra.mxu0 %v414
    %1215 = vmatprep.subr.mxu0 %v411
    %1216 = vmatpush1.msra.mxu0 %v410
    %1217 = vmatprep.subr.mxu0 %v407
    %1218 = vmatpush1.msra.mxu0 %v406
    %1219 = vmatprep.subr.mxu0 %v403
    %1220 = vmatpush1.msra.mxu0 %v402
    %1221 = vmatprep.subr.mxu0 %v399
    %1222 = vmatpush1.msra.mxu0 %v398
    %1223 = vmatprep.subr.mxu0 %v395
    %1224 = vmatpush1.msra.mxu0 %v394
    %1225 = vmatprep.subr.mxu0 %v391
    %1226 = vmatpush1.msra.mxu0 %v390
    %1227 = vmatprep.subr.mxu0 %v387
    %1228 = vmatpush1.msra.mxu0 %v386
    %1229 = vmatprep.subr.mxu0 %v383
    %1230 = vmatpush1.msra.mxu0 %v382
    %1231 = vmatprep.subr.mxu0 %v379
    %1232 = vmatpush1.msra.mxu0 %v378
    %1233 = vmatprep.subr.mxu0 %v375
    %1234 = vmatpush1.msra.mxu0 %v374
    %1235 = vmatprep.subr.mxu0 0.0
    %1236 = vmatpush2.msra.mxu0 0.0
    %1237 = vmatprep.subr.mxu0 0.0
    %1238 = vmatpush2.msra.mxu0 0.0
    %1239 = vmatprep.subr.mxu0 0.0
    %1240 = vmatpush2.msra.mxu0 0.0
    %1241 = vmatprep.subr.mxu0 0.0
    %1242 = vmatpush2.msra.mxu0 0.0
    %1243 = vmatprep.subr.mxu0 0.0
    %1244 = vmatpush2.msra.mxu0 0.0
    %1245 = vmatprep.subr.mxu0 0.0
    %1246 = vmatpush2.msra.mxu0 0.0
    %1247 = vmatprep.subr.mxu0 0.0
    %1248 = vmatpush2.msra.mxu0 0.0
    %1249 = vmatprep.subr.mxu0 0.0
    %1250 = vmatpush2.msra.mxu0 0.0
    %1251 = vmatprep.subr.mxu0 0.0
    %1252 = vmatpush2.msra.mxu0 0.0
    %1253 = vmatprep.subr.mxu0 0.0
    %1254 = vmatpush2.msra.mxu0 0.0
    %1255 = vmatprep.subr.mxu0 0.0
    %1256 = vmatpush2.msra.mxu0 0.0
    %1257 = vmatprep.subr.mxu0 0.0
    %1258 = vmatpush2.msra.mxu0 0.0
    %1259 = vmatprep.subr.mxu0 0.0
    %1260 = vmatpush2.msra.mxu0 0.0
    %1261 = vmatprep.subr.mxu0 0.0
    %1262 = vmatpush2.msra.mxu0 0.0
    %1263 = vmatprep.subr.mxu0 0.0
    %1264 = vmatpush2.msra.mxu0 0.0
    %1265 = vmatprep.subr.mxu0 0.0
    %1266 = vmatpush2.msra.mxu0 0.0
    %1267 = vmatprep.mubr.f32.mxu0 0.0
    %1268 = vmatmul.mubr.f32.gmra.mxu0 %v1127
    %v1269 = vpop.f32.mrf.mxu0
    %v1270 = vadd.f32 0.0, %v1269
    %v1271 = vpop.f32.mrf.mxu0
    %v1272 = vadd.f32 0.0, %v1271
    %1273 = vdwg.mxu0
    %v1274 = vadd.f32 %v1128, %v1199
    %v1275 = vadd.f32 %v1129, %v1201
    %v1276 = vadd.f32 %v1130, %v1270
    %v1277 = vadd.f32 %v1131, %v1272
    %v1278 = vxor.u32 %v1274, 2147483648
    %v1279 = vmul.f32 %v1278, 1.442695
    %v1280 = vpow.pop %v1279
    %v1281 = vadd.f32 %v1280, 1.0
    %v1282 = vrcp.pop %v1281
    %v1283 = vmul.f32 1.0, %v1282
    %v1284 = vxor.u32 %v1275, 2147483648
    %v1285 = vmul.f32 %v1284, 1.442695
    %v1286 = vpow.pop %v1285
    %v1287 = vadd.f32 %v1286, 1.0
    %v1288 = vrcp.pop %v1287
    %v1289 = vmul.f32 1.0, %v1288
    %v1290 = vtanh.pop %v1276
    %v1291 = vxor.u32 %v1277, 2147483648
    %v1292 = vmul.f32 %v1291, 1.442695
    %v1293 = vpow.pop %v1292
    %v1294 = vadd.f32 %v1293, 1.0
    %v1295 = vrcp.pop %v1294
    %v1296 = vmul.f32 1.0, %v1295
    %v1297 = vmul.f32 %v1289, %v1125
    %v1298 = vmul.f32 %v1283, %v1290
    %v1299 = vadd.f32 %v1297, %v1298
    %v1300 = vtanh.pop %v1299
    %v1301 = vmul.f32 %v1296, %v1300
    %v1302 = vld [vmem:[#allocation2 + $0xa0] sm:$0xff]
    %v1303 = vld [vmem:[#allocation2 + $0xa8] sm:$0xff]
    %v1304 = vld [vmem:[#allocation2 + $0xb0] sm:$0xff]
    %v1305 = vld [vmem:[#allocation2 + $0xb8] sm:$0xff]
    %1306 = vmatprep.subr.mxu0 %v433
    %1307 = vmatpush1.msra.mxu0 %v432
    %1308 = vmatprep.subr.mxu0 %v429
    %1309 = vmatpush1.msra.mxu0 %v428
    %1310 = vmatprep.subr.mxu0 %v425
    %1311 = vmatpush1.msra.mxu0 %v424
    %1312 = vmatprep.subr.mxu0 %v421
    %1313 = vmatpush1.msra.mxu0 %v420
    %1314 = vmatprep.subr.mxu0 %v417
    %1315 = vmatpush1.msra.mxu0 %v416
    %1316 = vmatprep.subr.mxu0 %v413
    %1317 = vmatpush1.msra.mxu0 %v412
    %1318 = vmatprep.subr.mxu0 %v409
    %1319 = vmatpush1.msra.mxu0 %v408
    %1320 = vmatprep.subr.mxu0 %v405
    %1321 = vmatpush1.msra.mxu0 %v404
    %1322 = vmatprep.subr.mxu0 %v401
    %1323 = vmatpush1.msra.mxu0 %v400
    %1324 = vmatprep.subr.mxu0 %v397
    %1325 = vmatpush1.msra.mxu0 %v396
    %1326 = vmatprep.subr.mxu0 %v393
    %1327 = vmatpush1.msra.mxu0 %v392
    %1328 = vmatprep.subr.mxu0 %v389
    %1329 = vmatpush1.msra.mxu0 %v388
    %1330 = vmatprep.subr.mxu0 %v385
    %1331 = vmatpush1.msra.mxu0 %v384
    %1332 = vmatprep.subr.mxu0 %v381
    %1333 = vmatpush1.msra.mxu0 %v380
    %1334 = vmatprep.subr.mxu0 %v377
    %1335 = vmatpush1.msra.mxu0 %v376
    %1336 = vmatprep.subr.mxu0 %v373
    %1337 = vmatpush1.msra.mxu0 %v372
    %1338 = vmatprep.subr.mxu0 0.0
    %1339 = vmatpush2.msra.mxu0 0.0
    %1340 = vmatprep.subr.mxu0 0.0
    %1341 = vmatpush2.msra.mxu0 0.0
    %1342 = vmatprep.subr.mxu0 0.0
    %1343 = vmatpush2.msra.mxu0 0.0
    %1344 = vmatprep.subr.mxu0 0.0
    %1345 = vmatpush2.msra.mxu0 0.0
    %1346 = vmatprep.subr.mxu0 0.0
    %1347 = vmatpush2.msra.mxu0 0.0
    %1348 = vmatprep.subr.mxu0 0.0
    %1349 = vmatpush2.msra.mxu0 0.0
    %1350 = vmatprep.subr.mxu0 0.0
    %1351 = vmatpush2.msra.mxu0 0.0
    %1352 = vmatprep.subr.mxu0 0.0
    %1353 = vmatpush2.msra.mxu0 0.0
    %1354 = vmatprep.subr.mxu0 0.0
    %1355 = vmatpush2.msra.mxu0 0.0
    %1356 = vmatprep.subr.mxu0 0.0
    %1357 = vmatpush2.msra.mxu0 0.0
    %1358 = vmatprep.subr.mxu0 0.0
    %1359 = vmatpush2.msra.mxu0 0.0
    %1360 = vmatprep.subr.mxu0 0.0
    %1361 = vmatpush2.msra.mxu0 0.0
    %1362 = vmatprep.subr.mxu0 0.0
    %1363 = vmatpush2.msra.mxu0 0.0
    %1364 = vmatprep.subr.mxu0 0.0
    %1365 = vmatpush2.msra.mxu0 0.0
    %1366 = vmatprep.subr.mxu0 0.0
    %1367 = vmatpush2.msra.mxu0 0.0
    %1368 = vmatprep.subr.mxu0 0.0
    %1369 = vmatpush2.msra.mxu0 0.0
    %1370 = vmatprep.mubr.f32.mxu0 0.0
    %1371 = vmatmul.mubr.f32.gmra.mxu0 %v1301
    %v1372 = vpop.f32.mrf.mxu0
    %v1373 = vadd.f32 0.0, %v1372
    %v1374 = vpop.f32.mrf.mxu0
    %v1375 = vadd.f32 0.0, %v1374
    %1376 = vdwg.mxu0
    %1377 = vmatprep.subr.mxu0 %v435
    %1378 = vmatpush1.msra.mxu0 %v434
    %1379 = vmatprep.subr.mxu0 %v431
    %1380 = vmatpush1.msra.mxu0 %v430
    %1381 = vmatprep.subr.mxu0 %v427
    %1382 = vmatpush1.msra.mxu0 %v426
    %1383 = vmatprep.subr.mxu0 %v423
    %1384 = vmatpush1.msra.mxu0 %v422
    %1385 = vmatprep.subr.mxu0 %v419
    %1386 = vmatpush1.msra.mxu0 %v418
    %1387 = vmatprep.subr.mxu0 %v415
    %1388 = vmatpush1.msra.mxu0 %v414
    %1389 = vmatprep.subr.mxu0 %v411
    %1390 = vmatpush1.msra.mxu0 %v410
    %1391 = vmatprep.subr.mxu0 %v407
    %1392 = vmatpush1.msra.mxu0 %v406
    %1393 = vmatprep.subr.mxu0 %v403
    %1394 = vmatpush1.msra.mxu0 %v402
    %1395 = vmatprep.subr.mxu0 %v399
    %1396 = vmatpush1.msra.mxu0 %v398
    %1397 = vmatprep.subr.mxu0 %v395
    %1398 = vmatpush1.msra.mxu0 %v394
    %1399 = vmatprep.subr.mxu0 %v391
    %1400 = vmatpush1.msra.mxu0 %v390
    %1401 = vmatprep.subr.mxu0 %v387
    %1402 = vmatpush1.msra.mxu0 %v386
    %1403 = vmatprep.subr.mxu0 %v383
    %1404 = vmatpush1.msra.mxu0 %v382
    %1405 = vmatprep.subr.mxu0 %v379
    %1406 = vmatpush1.msra.mxu0 %v378
    %1407 = vmatprep.subr.mxu0 %v375
    %1408 = vmatpush1.msra.mxu0 %v374
    %1409 = vmatprep.subr.mxu0 0.0
    %1410 = vmatpush2.msra.mxu0 0.0
    %1411 = vmatprep.subr.mxu0 0.0
    %1412 = vmatpush2.msra.mxu0 0.0
    %1413 = vmatprep.subr.mxu0 0.0
    %1414 = vmatpush2.msra.mxu0 0.0
    %1415 = vmatprep.subr.mxu0 0.0
    %1416 = vmatpush2.msra.mxu0 0.0
    %1417 = vmatprep.subr.mxu0 0.0
    %1418 = vmatpush2.msra.mxu0 0.0
    %1419 = vmatprep.subr.mxu0 0.0
    %1420 = vmatpush2.msra.mxu0 0.0
    %1421 = vmatprep.subr.mxu0 0.0
    %1422 = vmatpush2.msra.mxu0 0.0
    %1423 = vmatprep.subr.mxu0 0.0
    %1424 = vmatpush2.msra.mxu0 0.0
    %1425 = vmatprep.subr.mxu0 0.0
    %1426 = vmatpush2.msra.mxu0 0.0
    %1427 = vmatprep.subr.mxu0 0.0
    %1428 = vmatpush2.msra.mxu0 0.0
    %1429 = vmatprep.subr.mxu0 0.0
    %1430 = vmatpush2.msra.mxu0 0.0
    %1431 = vmatprep.subr.mxu0 0.0
    %1432 = vmatpush2.msra.mxu0 0.0
    %1433 = vmatprep.subr.mxu0 0.0
    %1434 = vmatpush2.msra.mxu0 0.0
    %1435 = vmatprep.subr.mxu0 0.0
    %1436 = vmatpush2.msra.mxu0 0.0
    %1437 = vmatprep.subr.mxu0 0.0
    %1438 = vmatpush2.msra.mxu0 0.0
    %1439 = vmatprep.subr.mxu0 0.0
    %1440 = vmatpush2.msra.mxu0 0.0
    %1441 = vmatprep.mubr.f32.mxu0 0.0
    %1442 = vmatmul.mubr.f32.gmra.mxu0 %v1301
    %v1443 = vpop.f32.mrf.mxu0
    %v1444 = vadd.f32 0.0, %v1443
    %v1445 = vpop.f32.mrf.mxu0
    %v1446 = vadd.f32 0.0, %v1445
    %1447 = vdwg.mxu0
    %v1448 = vadd.f32 %v1302, %v1373
    %v1449 = vadd.f32 %v1303, %v1375
    %v1450 = vadd.f32 %v1304, %v1444
    %v1451 = vadd.f32 %v1305, %v1446
    %v1452 = vxor.u32 %v1448, 2147483648
    %v1453 = vmul.f32 %v1452, 1.442695
    %v1454 = vpow.pop %v1453
    %v1455 = vadd.f32 %v1454, 1.0
    %v1456 = vrcp.pop %v1455
    %v1457 = vmul.f32 1.0, %v1456
    %v1458 = vxor.u32 %v1449, 2147483648
    %v1459 = vmul.f32 %v1458, 1.442695
    %v1460 = vpow.pop %v1459
    %v1461 = vadd.f32 %v1460, 1.0
    %v1462 = vrcp.pop %v1461
    %v1463 = vmul.f32 1.0, %v1462
    %v1464 = vtanh.pop %v1450
    %v1465 = vxor.u32 %v1451, 2147483648
    %v1466 = vmul.f32 %v1465, 1.442695
    %v1467 = vpow.pop %v1466
    %v1468 = vadd.f32 %v1467, 1.0
    %v1469 = vrcp.pop %v1468
    %v1470 = vmul.f32 1.0, %v1469
    %v1471 = vmul.f32 %v1463, %v1299
    %v1472 = vmul.f32 %v1457, %v1464
    %v1473 = vadd.f32 %v1471, %v1472
    %v1474 = vtanh.pop %v1473
    %v1475 = vmul.f32 %v1470, %v1474
    %v1476 = vld [vmem:[#allocation2 + $0xc0] sm:$0xff]
    %v1477 = vld [vmem:[#allocation2 + $0xc8] sm:$0xff]
    %v1478 = vld [vmem:[#allocation2 + $0xd0] sm:$0xff]
    %v1479 = vld [vmem:[#allocation2 + $0xd8] sm:$0xff]
    %1480 = vmatprep.subr.mxu0 %v433
    %1481 = vmatpush1.msra.mxu0 %v432
    %1482 = vmatprep.subr.mxu0 %v429
    %1483 = vmatpush1.msra.mxu0 %v428
    %1484 = vmatprep.subr.mxu0 %v425
    %1485 = vmatpush1.msra.mxu0 %v424
    %1486 = vmatprep.subr.mxu0 %v421
    %1487 = vmatpush1.msra.mxu0 %v420
    %1488 = vmatprep.subr.mxu0 %v417
    %1489 = vmatpush1.msra.mxu0 %v416
    %1490 = vmatprep.subr.mxu0 %v413
    %1491 = vmatpush1.msra.mxu0 %v412
    %1492 = vmatprep.subr.mxu0 %v409
    %1493 = vmatpush1.msra.mxu0 %v408
    %1494 = vmatprep.subr.mxu0 %v405
    %1495 = vmatpush1.msra.mxu0 %v404
    %1496 = vmatprep.subr.mxu0 %v401
    %1497 = vmatpush1.msra.mxu0 %v400
    %1498 = vmatprep.subr.mxu0 %v397
    %1499 = vmatpush1.msra.mxu0 %v396
    %1500 = vmatprep.subr.mxu0 %v393
    %1501 = vmatpush1.msra.mxu0 %v392
    %1502 = vmatprep.subr.mxu0 %v389
    %1503 = vmatpush1.msra.mxu0 %v388
    %1504 = vmatprep.subr.mxu0 %v385
    %1505 = vmatpush1.msra.mxu0 %v384
    %1506 = vmatprep.subr.mxu0 %v381
    %1507 = vmatpush1.msra.mxu0 %v380
    %1508 = vmatprep.subr.mxu0 %v377
    %1509 = vmatpush1.msra.mxu0 %v376
    %1510 = vmatprep.subr.mxu0 %v373
    %1511 = vmatpush1.msra.mxu0 %v372
    %1512 = vmatprep.subr.mxu0 0.0
    %1513 = vmatpush2.msra.mxu0 0.0
    %1514 = vmatprep.subr.mxu0 0.0
    %1515 = vmatpush2.msra.mxu0 0.0
    %1516 = vmatprep.subr.mxu0 0.0
    %1517 = vmatpush2.msra.mxu0 0.0
    %1518 = vmatprep.subr.mxu0 0.0
    %1519 = vmatpush2.msra.mxu0 0.0
    %1520 = vmatprep.subr.mxu0 0.0
    %1521 = vmatpush2.msra.mxu0 0.0
    %1522 = vmatprep.subr.mxu0 0.0
    %1523 = vmatpush2.msra.mxu0 0.0
    %1524 = vmatprep.subr.mxu0 0.0
    %1525 = vmatpush2.msra.mxu0 0.0
    %1526 = vmatprep.subr.mxu0 0.0
    %1527 = vmatpush2.msra.mxu0 0.0
    %1528 = vmatprep.subr.mxu0 0.0
    %1529 = vmatpush2.msra.mxu0 0.0
    %1530 = vmatprep.subr.mxu0 0.0
    %1531 = vmatpush2.msra.mxu0 0.0
    %1532 = vmatprep.subr.mxu0 0.0
    %1533 = vmatpush2.msra.mxu0 0.0
    %1534 = vmatprep.subr.mxu0 0.0
    %1535 = vmatpush2.msra.mxu0 0.0
    %1536 = vmatprep.subr.mxu0 0.0
    %1537 = vmatpush2.msra.mxu0 0.0
    %1538 = vmatprep.subr.mxu0 0.0
    %1539 = vmatpush2.msra.mxu0 0.0
    %1540 = vmatprep.subr.mxu0 0.0
    %1541 = vmatpush2.msra.mxu0 0.0
    %1542 = vmatprep.subr.mxu0 0.0
    %1543 = vmatpush2.msra.mxu0 0.0
    %1544 = vmatprep.mubr.f32.mxu0 0.0
    %1545 = vmatmul.mubr.f32.gmra.mxu0 %v1475
    %v1546 = vpop.f32.mrf.mxu0
    %v1547 = vadd.f32 0.0, %v1546
    %v1548 = vpop.f32.mrf.mxu0
    %v1549 = vadd.f32 0.0, %v1548
    %1550 = vdwg.mxu0
    %1551 = vmatprep.subr.mxu0 %v435
    %1552 = vmatpush1.msra.mxu0 %v434
    %1553 = vmatprep.subr.mxu0 %v431
    %1554 = vmatpush1.msra.mxu0 %v430
    %1555 = vmatprep.subr.mxu0 %v427
    %1556 = vmatpush1.msra.mxu0 %v426
    %1557 = vmatprep.subr.mxu0 %v423
    %1558 = vmatpush1.msra.mxu0 %v422
    %1559 = vmatprep.subr.mxu0 %v419
    %1560 = vmatpush1.msra.mxu0 %v418
    %1561 = vmatprep.subr.mxu0 %v415
    %1562 = vmatpush1.msra.mxu0 %v414
    %1563 = vmatprep.subr.mxu0 %v411
    %1564 = vmatpush1.msra.mxu0 %v410
    %1565 = vmatprep.subr.mxu0 %v407
    %1566 = vmatpush1.msra.mxu0 %v406
    %1567 = vmatprep.subr.mxu0 %v403
    %1568 = vmatpush1.msra.mxu0 %v402
    %1569 = vmatprep.subr.mxu0 %v399
    %1570 = vmatpush1.msra.mxu0 %v398
    %1571 = vmatprep.subr.mxu0 %v395
    %1572 = vmatpush1.msra.mxu0 %v394
    %1573 = vmatprep.subr.mxu0 %v391
    %1574 = vmatpush1.msra.mxu0 %v390
    %1575 = vmatprep.subr.mxu0 %v387
    %1576 = vmatpush1.msra.mxu0 %v386
    %1577 = vmatprep.subr.mxu0 %v383
    %1578 = vmatpush1.msra.mxu0 %v382
    %1579 = vmatprep.subr.mxu0 %v379
    %1580 = vmatpush1.msra.mxu0 %v378
    %1581 = vmatprep.subr.mxu0 %v375
    %1582 = vmatpush1.msra.mxu0 %v374
    %1583 = vmatprep.subr.mxu0 0.0
    %1584 = vmatpush2.msra.mxu0 0.0
    %1585 = vmatprep.subr.mxu0 0.0
    %1586 = vmatpush2.msra.mxu0 0.0
    %1587 = vmatprep.subr.mxu0 0.0
    %1588 = vmatpush2.msra.mxu0 0.0
    %1589 = vmatprep.subr.mxu0 0.0
    %1590 = vmatpush2.msra.mxu0 0.0
    %1591 = vmatprep.subr.mxu0 0.0
    %1592 = vmatpush2.msra.mxu0 0.0
    %1593 = vmatprep.subr.mxu0 0.0
    %1594 = vmatpush2.msra.mxu0 0.0
    %1595 = vmatprep.subr.mxu0 0.0
    %1596 = vmatpush2.msra.mxu0 0.0
    %1597 = vmatprep.subr.mxu0 0.0
    %1598 = vmatpush2.msra.mxu0 0.0
    %1599 = vmatprep.subr.mxu0 0.0
    %1600 = vmatpush2.msra.mxu0 0.0
    %1601 = vmatprep.subr.mxu0 0.0
    %1602 = vmatpush2.msra.mxu0 0.0
    %1603 = vmatprep.subr.mxu0 0.0
    %1604 = vmatpush2.msra.mxu0 0.0
    %1605 = vmatprep.subr.mxu0 0.0
    %1606 = vmatpush2.msra.mxu0 0.0
    %1607 = vmatprep.subr.mxu0 0.0
    %1608 = vmatpush2.msra.mxu0 0.0
    %1609 = vmatprep.subr.mxu0 0.0
    %1610 = vmatpush2.msra.mxu0 0.0
    %1611 = vmatprep.subr.mxu0 0.0
    %1612 = vmatpush2.msra.mxu0 0.0
    %1613 = vmatprep.subr.mxu0 0.0
    %1614 = vmatpush2.msra.mxu0 0.0
    %1615 = vmatprep.mubr.f32.mxu0 0.0
    %1616 = vmatmul.mubr.f32.gmra.mxu0 %v1475
    %v1617 = vpop.f32.mrf.mxu0
    %v1618 = vadd.f32 0.0, %v1617
    %v1619 = vpop.f32.mrf.mxu0
    %v1620 = vadd.f32 0.0, %v1619
    %1621 = vdwg.mxu0
    %v1622 = vadd.f32 %v1476, %v1547
    %v1623 = vadd.f32 %v1477, %v1549
    %v1624 = vadd.f32 %v1478, %v1618
    %v1625 = vadd.f32 %v1479, %v1620
    %v1626 = vxor.u32 %v1622, 2147483648
    %v1627 = vmul.f32 %v1626, 1.442695
    %v1628 = vpow.pop %v1627
    %v1629 = vadd.f32 %v1628, 1.0
    %v1630 = vrcp.pop %v1629
    %v1631 = vmul.f32 1.0, %v1630
    %v1632 = vxor.u32 %v1623, 2147483648
    %v1633 = vmul.f32 %v1632, 1.442695
    %v1634 = vpow.pop %v1633
    %v1635 = vadd.f32 %v1634, 1.0
    %v1636 = vrcp.pop %v1635
    %v1637 = vmul.f32 1.0, %v1636
    %v1638 = vtanh.pop %v1624
    %v1639 = vxor.u32 %v1625, 2147483648
    %v1640 = vmul.f32 %v1639, 1.442695
    %v1641 = vpow.pop %v1640
    %v1642 = vadd.f32 %v1641, 1.0
    %v1643 = vrcp.pop %v1642
    %v1644 = vmul.f32 1.0, %v1643
    %v1645 = vmul.f32 %v1637, %v1473
    %v1646 = vmul.f32 %v1631, %v1638
    %v1647 = vadd.f32 %v1645, %v1646
    %v1648 = vtanh.pop %v1647
    %v1649 = vmul.f32 %v1644, %v1648
    %v1650 = vld [vmem:[#allocation2 + $0xe0] sm:$0xff]
    %v1651 = vld [vmem:[#allocation2 + $0xe8] sm:$0xff]
    %v1652 = vld [vmem:[#allocation2 + $0xf0] sm:$0xff]
    %v1653 = vld [vmem:[#allocation2 + $0xf8] sm:$0xff]
    %1654 = vmatprep.subr.mxu0 %v433
    %1655 = vmatpush1.msra.mxu0 %v432
    %1656 = vmatprep.subr.mxu0 %v429
    %1657 = vmatpush1.msra.mxu0 %v428
    %1658 = vmatprep.subr.mxu0 %v425
    %1659 = vmatpush1.msra.mxu0 %v424
    %1660 = vmatprep.subr.mxu0 %v421
    %1661 = vmatpush1.msra.mxu0 %v420
    %1662 = vmatprep.subr.mxu0 %v417
    %1663 = vmatpush1.msra.mxu0 %v416
    %1664 = vmatprep.subr.mxu0 %v413
    %1665 = vmatpush1.msra.mxu0 %v412
    %1666 = vmatprep.subr.mxu0 %v409
    %1667 = vmatpush1.msra.mxu0 %v408
    %1668 = vmatprep.subr.mxu0 %v405
    %1669 = vmatpush1.msra.mxu0 %v404
    %1670 = vmatprep.subr.mxu0 %v401
    %1671 = vmatpush1.msra.mxu0 %v400
    %1672 = vmatprep.subr.mxu0 %v397
    %1673 = vmatpush1.msra.mxu0 %v396
    %1674 = vmatprep.subr.mxu0 %v393
    %1675 = vmatpush1.msra.mxu0 %v392
    %1676 = vmatprep.subr.mxu0 %v389
    %1677 = vmatpush1.msra.mxu0 %v388
    %1678 = vmatprep.subr.mxu0 %v385
    %1679 = vmatpush1.msra.mxu0 %v384
    %1680 = vmatprep.subr.mxu0 %v381
    %1681 = vmatpush1.msra.mxu0 %v380
    %1682 = vmatprep.subr.mxu0 %v377
    %1683 = vmatpush1.msra.mxu0 %v376
    %1684 = vmatprep.subr.mxu0 %v373
    %1685 = vmatpush1.msra.mxu0 %v372
    %1686 = vmatprep.subr.mxu0 0.0
    %1687 = vmatpush2.msra.mxu0 0.0
    %1688 = vmatprep.subr.mxu0 0.0
    %1689 = vmatpush2.msra.mxu0 0.0
    %1690 = vmatprep.subr.mxu0 0.0
    %1691 = vmatpush2.msra.mxu0 0.0
    %1692 = vmatprep.subr.mxu0 0.0
    %1693 = vmatpush2.msra.mxu0 0.0
    %1694 = vmatprep.subr.mxu0 0.0
    %1695 = vmatpush2.msra.mxu0 0.0
    %1696 = vmatprep.subr.mxu0 0.0
    %1697 = vmatpush2.msra.mxu0 0.0
    %1698 = vmatprep.subr.mxu0 0.0
    %1699 = vmatpush2.msra.mxu0 0.0
    %1700 = vmatprep.subr.mxu0 0.0
    %1701 = vmatpush2.msra.mxu0 0.0
    %1702 = vmatprep.subr.mxu0 0.0
    %1703 = vmatpush2.msra.mxu0 0.0
    %1704 = vmatprep.subr.mxu0 0.0
    %1705 = vmatpush2.msra.mxu0 0.0
    %1706 = vmatprep.subr.mxu0 0.0
    %1707 = vmatpush2.msra.mxu0 0.0
    %1708 = vmatprep.subr.mxu0 0.0
    %1709 = vmatpush2.msra.mxu0 0.0
    %1710 = vmatprep.subr.mxu0 0.0
    %1711 = vmatpush2.msra.mxu0 0.0
    %1712 = vmatprep.subr.mxu0 0.0
    %1713 = vmatpush2.msra.mxu0 0.0
    %1714 = vmatprep.subr.mxu0 0.0
    %1715 = vmatpush2.msra.mxu0 0.0
    %1716 = vmatprep.subr.mxu0 0.0
    %1717 = vmatpush2.msra.mxu0 0.0
    %1718 = vmatprep.mubr.f32.mxu0 0.0
    %1719 = vmatmul.mubr.f32.gmra.mxu0 %v1649
    %v1720 = vpop.f32.mrf.mxu0
    %v1721 = vadd.f32 0.0, %v1720
    %v1722 = vpop.f32.mrf.mxu0
    %v1723 = vadd.f32 0.0, %v1722
    %1724 = vdwg.mxu0
    %1725 = vmatprep.subr.mxu0 %v435
    %1726 = vmatpush1.msra.mxu0 %v434
    %1727 = vmatprep.subr.mxu0 %v431
    %1728 = vmatpush1.msra.mxu0 %v430
    %1729 = vmatprep.subr.mxu0 %v427
    %1730 = vmatpush1.msra.mxu0 %v426
    %1731 = vmatprep.subr.mxu0 %v423
    %1732 = vmatpush1.msra.mxu0 %v422
    %1733 = vmatprep.subr.mxu0 %v419
    %1734 = vmatpush1.msra.mxu0 %v418
    %1735 = vmatprep.subr.mxu0 %v415
    %1736 = vmatpush1.msra.mxu0 %v414
    %1737 = vmatprep.subr.mxu0 %v411
    %1738 = vmatpush1.msra.mxu0 %v410
    %1739 = vmatprep.subr.mxu0 %v407
    %1740 = vmatpush1.msra.mxu0 %v406
    %1741 = vmatprep.subr.mxu0 %v403
    %1742 = vmatpush1.msra.mxu0 %v402
    %1743 = vmatprep.subr.mxu0 %v399
    %1744 = vmatpush1.msra.mxu0 %v398
    %1745 = vmatprep.subr.mxu0 %v395
    %1746 = vmatpush1.msra.mxu0 %v394
    %1747 = vmatprep.subr.mxu0 %v391
    %1748 = vmatpush1.msra.mxu0 %v390
    %1749 = vmatprep.subr.mxu0 %v387
    %1750 = vmatpush1.msra.mxu0 %v386
    %1751 = vmatprep.subr.mxu0 %v383
    %1752 = vmatpush1.msra.mxu0 %v382
    %1753 = vmatprep.subr.mxu0 %v379
    %1754 = vmatpush1.msra.mxu0 %v378
    %1755 = vmatprep.subr.mxu0 %v375
    %1756 = vmatpush1.msra.mxu0 %v374
    %1757 = vmatprep.subr.mxu0 0.0
    %1758 = vmatpush2.msra.mxu0 0.0
    %1759 = vmatprep.subr.mxu0 0.0
    %1760 = vmatpush2.msra.mxu0 0.0
    %1761 = vmatprep.subr.mxu0 0.0
    %1762 = vmatpush2.msra.mxu0 0.0
    %1763 = vmatprep.subr.mxu0 0.0
    %1764 = vmatpush2.msra.mxu0 0.0
    %1765 = vmatprep.subr.mxu0 0.0
    %1766 = vmatpush2.msra.mxu0 0.0
    %1767 = vmatprep.subr.mxu0 0.0
    %1768 = vmatpush2.msra.mxu0 0.0
    %1769 = vmatprep.subr.mxu0 0.0
    %1770 = vmatpush2.msra.mxu0 0.0
    %1771 = vmatprep.subr.mxu0 0.0
    %1772 = vmatpush2.msra.mxu0 0.0
    %1773 = vmatprep.subr.mxu0 0.0
    %1774 = vmatpush2.msra.mxu0 0.0
    %1775 = vmatprep.subr.mxu0 0.0
    %1776 = vmatpush2.msra.mxu0 0.0
    %1777 = vmatprep.subr.mxu0 0.0
    %1778 = vmatpush2.msra.mxu0 0.0
    %1779 = vmatprep.subr.mxu0 0.0
    %1780 = vmatpush2.msra.mxu0 0.0
    %1781 = vmatprep.subr.mxu0 0.0
    %1782 = vmatpush2.msra.mxu0 0.0
    %1783 = vmatprep.subr.mxu0 0.0
    %1784 = vmatpush2.msra.mxu0 0.0
    %1785 = vmatprep.subr.mxu0 0.0
    %1786 = vmatpush2.msra.mxu0 0.0
    %1787 = vmatprep.subr.mxu0 0.0
    %1788 = vmatpush2.msra.mxu0 0.0
    %1789 = vmatprep.mubr.f32.mxu0 0.0
    %1790 = vmatmul.mubr.f32.gmra.mxu0 %v1649
    %v1791 = vpop.f32.mrf.mxu0
    %v1792 = vadd.f32 0.0, %v1791
    %v1793 = vpop.f32.mrf.mxu0
    %v1794 = vadd.f32 0.0, %v1793
    %1795 = vdwg.mxu0
    %v1796 = vadd.f32 %v1650, %v1721
    %v1797 = vadd.f32 %v1651, %v1723
    %v1798 = vadd.f32 %v1652, %v1792
    %v1799 = vadd.f32 %v1653, %v1794
    %v1800 = vxor.u32 %v1796, 2147483648
    %v1801 = vmul.f32 %v1800, 1.442695
    %v1802 = vpow.pop %v1801
    %v1803 = vadd.f32 %v1802, 1.0
    %v1804 = vrcp.pop %v1803
    %v1805 = vmul.f32 1.0, %v1804
    %v1806 = vxor.u32 %v1797, 2147483648
    %v1807 = vmul.f32 %v1806, 1.442695
    %v1808 = vpow.pop %v1807
    %v1809 = vadd.f32 %v1808, 1.0
    %v1810 = vrcp.pop %v1809
    %v1811 = vmul.f32 1.0, %v1810
    %v1812 = vtanh.pop %v1798
    %v1813 = vxor.u32 %v1799, 2147483648
    %v1814 = vmul.f32 %v1813, 1.442695
    %v1815 = vpow.pop %v1814
    %v1816 = vadd.f32 %v1815, 1.0
    %v1817 = vrcp.pop %v1816
    %v1818 = vmul.f32 1.0, %v1817
    %v1819 = vmul.f32 %v1811, %v1647
    %v1820 = vmul.f32 %v1805, %v1812
    %v1821 = vadd.f32 %v1819, %v1820
    %v1822 = vtanh.pop %v1821
    %v1823 = vmul.f32 %v1818, %v1822
    %v1824 = vld [vmem:[#allocation5] sm:$0xff]
    %v1825 = vld [vmem:[#allocation5 + $0x8] sm:$0xff]
    %v1826 = vld [vmem:[#allocation5 + $0x10] sm:$0xff]
    %v1827 = vld [vmem:[#allocation5 + $0x18] sm:$0xff]
    %v1828 = vld [vmem:[#allocation5 + $0x20] sm:$0xff]
    %v1829 = vld [vmem:[#allocation5 + $0x28] sm:$0xff]
    %v1830 = vld [vmem:[#allocation5 + $0x30] sm:$0xff]
    %v1831 = vld [vmem:[#allocation5 + $0x38] sm:$0xff]
    %v1832 = vld [vmem:[#allocation5 + $0x40] sm:$0xff]
    %v1833 = vld [vmem:[#allocation5 + $0x48] sm:$0xff]
    %v1834 = vld [vmem:[#allocation5 + $0x50] sm:$0xff]
    %v1835 = vld [vmem:[#allocation5 + $0x58] sm:$0xff]
    %v1836 = vld [vmem:[#allocation5 + $0x60] sm:$0xff]
    %v1837 = vld [vmem:[#allocation5 + $0x68] sm:$0xff]
    %v1838 = vld [vmem:[#allocation5 + $0x70] sm:$0xff]
    %v1839 = vld [vmem:[#allocation5 + $0x78] sm:$0xff]
    %v1840 = vld [vmem:[%s5] sm:$0x1]
    %v1842 = vlaneseq
    %v1843 = vshrl.u32 %v1842, 7
    %v1844 = vsub.s32 0, %v1843
    %v1845 = vrot.slane %v1840, %v1844
    %1847 = vmatprep.subr.mxu0 0.0
    %1848 = vmatpush1.msra.mxu0 %v1839
    %1849 = vmatprep.subr.mxu0 0.0
    %1850 = vmatpush1.msra.mxu0 %v1838
    %1851 = vmatprep.subr.mxu0 0.0
    %1852 = vmatpush1.msra.mxu0 %v1837
    %1853 = vmatprep.subr.mxu0 0.0
    %1854 = vmatpush1.msra.mxu0 %v1836
    %1855 = vmatprep.subr.mxu0 0.0
    %1856 = vmatpush1.msra.mxu0 %v1835
    %1857 = vmatprep.subr.mxu0 0.0
    %1858 = vmatpush1.msra.mxu0 %v1834
    %1859 = vmatprep.subr.mxu0 0.0
    %1860 = vmatpush1.msra.mxu0 %v1833
    %1861 = vmatprep.subr.mxu0 0.0
    %1862 = vmatpush1.msra.mxu0 %v1832
    %1863 = vmatprep.subr.mxu0 0.0
    %1864 = vmatpush1.msra.mxu0 %v1831
    %1865 = vmatprep.subr.mxu0 0.0
    %1866 = vmatpush1.msra.mxu0 %v1830
    %1867 = vmatprep.subr.mxu0 0.0
    %1868 = vmatpush1.msra.mxu0 %v1829
    %1869 = vmatprep.subr.mxu0 0.0
    %1870 = vmatpush1.msra.mxu0 %v1828
    %1871 = vmatprep.subr.mxu0 0.0
    %1872 = vmatpush1.msra.mxu0 %v1827
    %1873 = vmatprep.subr.mxu0 0.0
    %1874 = vmatpush1.msra.mxu0 %v1826
    %1875 = vmatprep.subr.mxu0 0.0
    %1876 = vmatpush1.msra.mxu0 %v1825
    %1877 = vmatprep.subr.mxu0 0.0
    %1878 = vmatpush1.msra.mxu0 %v1824
    %1879 = vmatprep.subr.mxu0 0.0
    %1880 = vmatpush2.msra.mxu0 0.0
    %1881 = vmatprep.subr.mxu0 0.0
    %1882 = vmatpush2.msra.mxu0 0.0
    %1883 = vmatprep.subr.mxu0 0.0
    %1884 = vmatpush2.msra.mxu0 0.0
    %1885 = vmatprep.subr.mxu0 0.0
    %1886 = vmatpush2.msra.mxu0 0.0
    %1887 = vmatprep.subr.mxu0 0.0
    %1888 = vmatpush2.msra.mxu0 0.0
    %1889 = vmatprep.subr.mxu0 0.0
    %1890 = vmatpush2.msra.mxu0 0.0
    %1891 = vmatprep.subr.mxu0 0.0
    %1892 = vmatpush2.msra.mxu0 0.0
    %1893 = vmatprep.subr.mxu0 0.0
    %1894 = vmatpush2.msra.mxu0 0.0
    %1895 = vmatprep.subr.mxu0 0.0
    %1896 = vmatpush2.msra.mxu0 0.0
    %1897 = vmatprep.subr.mxu0 0.0
    %1898 = vmatpush2.msra.mxu0 0.0
    %1899 = vmatprep.subr.mxu0 0.0
    %1900 = vmatpush2.msra.mxu0 0.0
    %1901 = vmatprep.subr.mxu0 0.0
    %1902 = vmatpush2.msra.mxu0 0.0
    %1903 = vmatprep.subr.mxu0 0.0
    %1904 = vmatpush2.msra.mxu0 0.0
    %1905 = vmatprep.subr.mxu0 0.0
    %1906 = vmatpush2.msra.mxu0 0.0
    %1907 = vmatprep.subr.mxu0 0.0
    %1908 = vmatpush2.msra.mxu0 0.0
    %1909 = vmatprep.subr.mxu0 0.0
    %1910 = vmatpush2.msra.mxu0 0.0
    %1911 = vmatprep.mubr.f32.mxu0 0.0
    %1912 = vmatmul.mubr.f32.gmra.mxu0 %v1823
    %v1913 = vpop.f32.mrf.mxu0
    %v1914 = vadd.f32 %v1845, %v1913
    %v1915 = vpop.f32.mrf.mxu0
    %1916 = vdwg.mxu0
    %1917 = vst [vmem:[%s6] sm:$0xff] %v1914
    // Predicated region
    $region34: #{lstm_forward_pallas.1} parent=1 // pred_check
      _
    $region35: #{lstm_forward_pallas.1} parent=1 // pred_check_branch
      %1919 = sbr.rel (0) target = $region37
    $region36: #{lstm_forward_pallas.1} parent=1 // pred_region
      _
    $region37: #{lstm_forward_pallas.1} parent=1 // pred_fallthru
      _
    // Predicated region
    $region38: #{lstm_forward_pallas.1} parent=1 // pred_check
      _
    $region39: #{lstm_forward_pallas.1} parent=1 // pred_check_branch
      %1921 = sbr.rel (0) target = $region41
    $region40: #{lstm_forward_pallas.1} parent=1 // pred_region
      _
    $region41: #{lstm_forward_pallas.1} parent=1 // pred_fallthru
      _
    %1922 = vsyncpa [#allocation4], 1
    %1923 = vsyncpa [#allocation6], 1

</llo_original>
